<compile_context>
chip_gen: v5e
topology: v5e:2x2
jax: 0.10.0
libtpu: 0.0.40
codegen_flags: <defaults>
</compile_context>

<pallas_src>
import math
from functools import partial

import jax
import jax.numpy as jnp
from jax.experimental import pallas as pl
from jax.experimental.pallas import tpu as pltpu


# ----------------------------------------------------------------------------
# Pallas kernels
# ----------------------------------------------------------------------------

def _layernorm(x, g, b, eps):
    mean = jnp.mean(x, axis=-1, keepdims=True)
    var = jnp.mean(jnp.square(x - mean), axis=-1, keepdims=True)
    return (x - mean) * jax.lax.rsqrt(var + eps) * g + b


def _bert_layer_kernel(x_ref, m_ref,
                       wqkv_ref, bqkv_ref,
                       wao_ref, bao_ref,
                       g1_ref, b1_ref,
                       wi_ref, bi_ref,
                       wo_ref, bo_ref,
                       g2_ref, b2_ref,
                       o_ref, *, nh, eps):
    """Entire BERT layer for one batch element; everything stays in VMEM."""
    S, H = x_ref.shape[1], x_ref.shape[2]
    dh = H // nh
    scale = 1.0 / math.sqrt(dh)

    x = x_ref[0]                                      # (S, H) fp32
    xb = x.astype(jnp.bfloat16)

    # ---- fused QKV projection --------------------------------------------
    qkv = jnp.dot(xb, wqkv_ref[...].astype(jnp.bfloat16),
                  preferred_element_type=jnp.float32) + bqkv_ref[...]   # (S, 3H)
    q = qkv[:, :H]
    k = qkv[:, H:2 * H]
    v = qkv[:, 2 * H:]

    # ---- additive mask built in-kernel from the 0/1 keep-mask row ---------
    bias = (1.0 - m_ref[0]) * -10000.0                # (1, S), broadcasts over rows

    # ---- multi-head scaled dot-product attention (static per-head slices) -
    ctx_heads = []
    for hi in range(nh):
        sl = slice(hi * dh, (hi + 1) * dh)
        qh = q[:, sl].astype(jnp.bfloat16)            # (S, dh)
        kh = k[:, sl].astype(jnp.bfloat16)
        vh = v[:, sl].astype(jnp.bfloat16)
        s = jnp.dot(qh, kh.T, preferred_element_type=jnp.float32) * scale + bias
        s = s - jnp.max(s, axis=-1, keepdims=True)
        p = jnp.exp(s)
        p = p * pl.reciprocal(jnp.sum(p, axis=-1, keepdims=True), approx=True)
        ctx_heads.append(jnp.dot(p.astype(jnp.bfloat16), vh,
                                 preferred_element_type=jnp.float32))
    ctx = jnp.concatenate(ctx_heads, axis=-1)         # (S, H) fp32, lane-dense

    # ---- attention output projection + residual LayerNorm -----------------
    attn_out = jnp.dot(ctx.astype(jnp.bfloat16), wao_ref[...].astype(jnp.bfloat16),
                       preferred_element_type=jnp.float32) + bao_ref[...]
    h1 = _layernorm(attn_out + x, g1_ref[...], b1_ref[...], eps)

    # ---- FFN (exact erf GELU) + residual LayerNorm -------------------------
    inter = jnp.dot(h1.astype(jnp.bfloat16), wi_ref[...].astype(jnp.bfloat16),
                    preferred_element_type=jnp.float32) + bi_ref[...]
    inter = 0.5 * inter * (1.0 + jax.lax.erf(inter * (1.0 / math.sqrt(2.0))))
    ffn_out = jnp.dot(inter.astype(jnp.bfloat16), wo_ref[...].astype(jnp.bfloat16),
                      preferred_element_type=jnp.float32) + bo_ref[...]
    out = _layernorm(ffn_out + h1, g2_ref[...], b2_ref[...], eps)

    o_ref[0] = out.astype(o_ref.dtype)


def _mix_kernel(s_ref, h1_ref, h2_ref, nrm_ref, uni_ref, o_ref, *, l):
    # s_ref (SMEM, shape (2,)): [add_scale, mul_scale] = [0.4*Beta(2,5), 0.2*Beta(2,5)]
    add_scale = s_ref[0]
    mul_scale = s_ref[1]
    h = l * h1_ref[...] + (1.0 - l) * h2_ref[...]
    add_noise = add_scale * nrm_ref[...]
    mul_noise = mul_scale * (2.0 * uni_ref[...] - 1.0) + 1.0
    o_ref[...] = (mul_noise * h + add_noise).astype(o_ref.dtype)


# ----------------------------------------------------------------------------
# Pallas wrappers
# ----------------------------------------------------------------------------

def bert_layer(h, attention_mask, p, cfg):
    """One fused BertLayer forward: h [B,S,H] fp32, attention_mask [B,S] (1=keep)."""
    B, S, H = h.shape
    I = p["i_w"].shape[1]
    nh = cfg.num_attention_heads

    mask3 = attention_mask.reshape(B, 1, S).astype(jnp.float32)

    x_spec = pl.BlockSpec((1, S, H), lambda b: (b, 0, 0))
    m_spec = pl.BlockSpec((1, 1, S), lambda b: (b, 0, 0))

    def full(shape):
        return pl.BlockSpec(shape, lambda b: (0,) * len(shape))

    return pl.pallas_call(
        partial(_bert_layer_kernel, nh=nh, eps=cfg.layer_norm_eps),
        grid=(B,),
        out_shape=jax.ShapeDtypeStruct((B, S, H), jnp.float32),
        in_specs=[
            x_spec, m_spec,
            full((H, 3 * H)), full((1, 3 * H)),     # fused QKV
            full((H, H)), full((1, H)),             # attention output proj
            full((1, H)), full((1, H)),             # LN1 gamma/beta
            full((H, I)), full((1, I)),             # intermediate
            full((I, H)), full((1, H)),             # FFN output
            full((1, H)), full((1, H)),             # LN2 gamma/beta
        ],
        out_specs=x_spec,
        compiler_params=pltpu.CompilerParams(
            dimension_semantics=("parallel",),
            vmem_limit_bytes=48 * 1024 * 1024,
        ),
    )(h, mask3,
      p["qkv_w"], p["qkv_b"].reshape(1, -1),
      p["ao_w"], p["ao_b"].reshape(1, -1),
      p["ln1_g"].reshape(1, -1), p["ln1_b"].reshape(1, -1),
      p["i_w"], p["i_b"].reshape(1, -1),
      p["o_w"], p["o_b"].reshape(1, -1),
      p["ln2_g"].reshape(1, -1), p["ln2_b"].reshape(1, -1))


def _mix_with_noise(h1, h2, l, noise_key):
    """l*h1 + (1-l)*h2, then mul/add noise scaled by fresh Beta(2,5) draws."""
    B, S, H = h1.shape
    M = B * S
    kb1, kb2, kn, ku = jax.random.split(noise_key, 4)
    add_scale = 0.4 * jax.random.beta(kb1, 2.0, 5.0)
    mul_scale = 0.2 * jax.random.beta(kb2, 2.0, 5.0)
    scales = jnp.stack([add_scale, mul_scale]).astype(jnp.float32)   # (2,)
    nrm = jax.random.normal(kn, (M, H), jnp.float32)
    uni = jax.random.uniform(ku, (M, H), jnp.float32)

    TM = M if M <= 256 else 256
    vspec = pl.BlockSpec((TM, H), lambda i: (i, 0))
    out = pl.pallas_call(
        partial(_mix_kernel, l=float(l)),
        grid=(pl.cdiv(M, TM),),
        out_shape=jax.ShapeDtypeStruct((M, H), jnp.float32),
        in_specs=[
            pl.BlockSpec(memory_space=pltpu.MemorySpace.SMEM),   # scalar scales
            vspec, vspec, vspec, vspec,
        ],
        out_specs=vspec,
        compiler_params=pltpu.CompilerParams(dimension_semantics=("parallel",)),
    )(scales, h1.reshape(M, H), h2.reshape(M, H), nrm, uni)
    return out.reshape(B, S, H)


# ----------------------------------------------------------------------------
# BertEncoder4Mix (plain-JAX glue around the fused kernels)
# ----------------------------------------------------------------------------

class Config:
    num_hidden_layers = 2
    hidden_size = 32
    num_attention_heads = 4
    intermediate_size = 64
    layer_norm_eps = 1e-12
    output_attentions = False
    output_hidden_states = False


def init_params(key, cfg):
    H, I = cfg.hidden_size, cfg.intermediate_size

    def w(k, shape):
        # matmul weights stored bf16 (halves weight DMA bytes; fp32 accumulation)
        return (0.02 * jax.random.normal(k, shape, jnp.float32)).astype(jnp.bfloat16)

    params = []
    for li in range(cfg.num_hidden_layers):
        keys = jax.random.split(jax.random.fold_in(key, li), 4)
        params.append({
            "qkv_w": w(keys[0], (H, 3 * H)), "qkv_b": jnp.zeros((3 * H,), jnp.float32),
            "ao_w": w(keys[1], (H, H)), "ao_b": jnp.zeros((H,), jnp.float32),
            "ln1_g": jnp.ones((H,), jnp.float32), "ln1_b": jnp.zeros((H,), jnp.float32),
            "i_w": w(keys[2], (H, I)), "i_b": jnp.zeros((I,), jnp.float32),
            "o_w": w(keys[3], (I, H)), "o_b": jnp.zeros((H,), jnp.float32),
            "ln2_g": jnp.ones((H,), jnp.float32), "ln2_b": jnp.zeros((H,), jnp.float32),
        })
    return params


def bert_encoder4mix(params, cfg, hidden_states, hidden_states2=None, l=None,
                     mix_layer=1000, attention_mask=None, attention_mask2=None,
                     noise_key=None):
    if noise_key is None:
        noise_key = jax.random.PRNGKey(0)

    B, S, _ = hidden_states.shape
    if attention_mask is None:
        attention_mask = jnp.ones((B, S), jnp.float32)
    if hidden_states2 is not None and attention_mask2 is None:
        attention_mask2 = jnp.ones((B, S), jnp.float32)

    all_hidden_states = ()
    all_attentions = ()   # TODO(synk): output_attentions needs attention probs from the fused kernel; not wired.

    if mix_layer == -1 and hidden_states2 is not None:
        hidden_states = _mix_with_noise(hidden_states, hidden_states2, l, noise_key)

    for i, p in enumerate(params):
        if i <= mix_layer:
            if cfg.output_hidden_states:
                all_hidden_states = all_hidden_states + (hidden_states,)
            hidden_states = bert_layer(hidden_states, attention_mask, p, cfg)
            if hidden_states2 is not None:
                hidden_states2 = bert_layer(hidden_states2, attention_mask2, p, cfg)
        if i == mix_layer:
            if hidden_states2 is not None:
                hidden_states = _mix_with_noise(hidden_states, hidden_states2, l, noise_key)
        if i > mix_layer:
            if cfg.output_hidden_states:
                all_hidden_states = all_hidden_states + (hidden_states,)
            hidden_states = bert_layer(hidden_states, attention_mask, p, cfg)

    if cfg.output_hidden_states:
        all_hidden_states = all_hidden_states + (hidden_states,)

    outputs = (hidden_states,)
    if cfg.output_hidden_states:
        outputs = outputs + (all_hidden_states,)
    if cfg.output_attentions:
        outputs = outputs + (all_attentions,)
    return outputs


# ----------------------------------------------------------------------------

if __name__ == "__main__":
    cfg = Config()
    key = jax.random.PRNGKey(0)
    kp, kh1, kh2, km = jax.random.split(key, 4)

    params = init_params(kp, cfg)

    B, S, H = 2, 8, cfg.hidden_size
    h1 = jax.random.normal(kh1, (B, S, H), jnp.float32)
    h2 = jax.random.normal(kh2, (B, S, H), jnp.float32)
    mask = jnp.ones((B, S), jnp.float32).at[1, 6:].set(0.0)
    mask2 = jnp.ones((B, S), jnp.float32)

    # mixed path (mix at layer 0, interpolation coefficient l)
    out_mix = bert_encoder4mix(params, cfg, h1, hidden_states2=h2, l=0.7,
                               mix_layer=0, attention_mask=mask,
                               attention_mask2=mask2, noise_key=km)
    jax.block_until_ready(out_mix[0])

    # mix-before-encoder path (mix_layer=-1)
    out_pre = bert_encoder4mix(params, cfg, h1, hidden_states2=h2, l=0.3,
                               mix_layer=-1, attention_mask=mask,
                               attention_mask2=mask2, noise_key=km)
    jax.block_until_ready(out_pre[0])

    # plain path (no second stream, mix_layer=1000 default)
    out_plain = bert_encoder4mix(params, cfg, h1, attention_mask=mask)
    jax.block_until_ready(out_plain[0])

    assert out_mix[0].shape == (B, S, H)
    assert out_pre[0].shape == (B, S, H)
    assert out_plain[0].shape == (B, S, H)
    assert bool(jnp.all(jnp.isfinite(out_mix[0])))
    assert bool(jnp.all(jnp.isfinite(out_pre[0])))
    assert bool(jnp.all(jnp.isfinite(out_plain[0])))
    print("KERNEL_OK")
</pallas_src>

<mosaic_0001>
module attributes {stable_mosaic.version = 11 : i64} {
  func.func @_bert_layer_kernel(%arg0: i32, %arg1: memref<1x8x32xf32, #tpu.memory_space<vmem>>, %arg2: memref<1x1x8xf32, #tpu.memory_space<vmem>>, %arg3: memref<32x96xbf16, #tpu.memory_space<vmem>>, %arg4: memref<1x96xf32, #tpu.memory_space<vmem>>, %arg5: memref<32x32xbf16, #tpu.memory_space<vmem>>, %arg6: memref<1x32xf32, #tpu.memory_space<vmem>>, %arg7: memref<1x32xf32, #tpu.memory_space<vmem>>, %arg8: memref<1x32xf32, #tpu.memory_space<vmem>>, %arg9: memref<32x64xbf16, #tpu.memory_space<vmem>>, %arg10: memref<1x64xf32, #tpu.memory_space<vmem>>, %arg11: memref<64x32xbf16, #tpu.memory_space<vmem>>, %arg12: memref<1x32xf32, #tpu.memory_space<vmem>>, %arg13: memref<1x32xf32, #tpu.memory_space<vmem>>, %arg14: memref<1x32xf32, #tpu.memory_space<vmem>>, %arg15: memref<1x8x32xf32, #tpu.memory_space<vmem>>) attributes {dimension_semantics = [#tpu.dimension_semantics<parallel>], iteration_bounds = array<i64: 2>, scalar_prefetch = 0 : i64, scratch_operands = 0 : i64, tpu.core_type = #tpu.core_type<tc>, window_params = [{transform_indices = @transform_0, window_bounds = array<i64: 1, 8, 32>}, {transform_indices = @transform_1, window_bounds = array<i64: 1, 1, 8>}, {pipeline_mode = #tpu.pipeline_mode<synchronous>, transform_indices = @transform_2, window_bounds = array<i64: 32, 96>}, {pipeline_mode = #tpu.pipeline_mode<synchronous>, transform_indices = @transform_3, window_bounds = array<i64: 1, 96>}, {pipeline_mode = #tpu.pipeline_mode<synchronous>, transform_indices = @transform_4, window_bounds = array<i64: 32, 32>}, {pipeline_mode = #tpu.pipeline_mode<synchronous>, transform_indices = @transform_5, window_bounds = array<i64: 1, 32>}, {pipeline_mode = #tpu.pipeline_mode<synchronous>, transform_indices = @transform_6, window_bounds = array<i64: 1, 32>}, {pipeline_mode = #tpu.pipeline_mode<synchronous>, transform_indices = @transform_7, window_bounds = array<i64: 1, 32>}, {pipeline_mode = #tpu.pipeline_mode<synchronous>, transform_indices = @transform_8, window_bounds = array<i64: 32, 64>}, {pipeline_mode = #tpu.pipeline_mode<synchronous>, transform_indices = @transform_9, window_bounds = array<i64: 1, 64>}, {pipeline_mode = #tpu.pipeline_mode<synchronous>, transform_indices = @transform_10, window_bounds = array<i64: 64, 32>}, {pipeline_mode = #tpu.pipeline_mode<synchronous>, transform_indices = @transform_11, window_bounds = array<i64: 1, 32>}, {pipeline_mode = #tpu.pipeline_mode<synchronous>, transform_indices = @transform_12, window_bounds = array<i64: 1, 32>}, {pipeline_mode = #tpu.pipeline_mode<synchronous>, transform_indices = @transform_13, window_bounds = array<i64: 1, 32>}, {transform_indices = @transform_14, window_bounds = array<i64: 1, 8, 32>}]} {
    %c0 = arith.constant 0 : index
    %c0_0 = arith.constant 0 : index
    %c0_1 = arith.constant 0 : index
    %0 = vector.load %arg1[%c0, %c0_0, %c0_1] : memref<1x8x32xf32, #tpu.memory_space<vmem>>, vector<1x8x32xf32>
    %1 = vector.shape_cast %0 : vector<1x8x32xf32> to vector<8x32xf32>
    %2 = arith.truncf %1 : vector<8x32xf32> to vector<8x32xbf16>
    %c0_2 = arith.constant 0 : index
    %c0_3 = arith.constant 0 : index
    %3 = vector.load %arg3[%c0_2, %c0_3] : memref<32x96xbf16, #tpu.memory_space<vmem>>, vector<32x96xbf16>
    %cst = arith.constant dense<0.000000e+00> : vector<8x96xf32>
    %4 = tpu.matmul %2, %3, %cst {dimension_numbers = #tpu.dot_dimension_numbers<[1], [0], [0], [1], [0, 0, 1, 1], [], []>} : vector<8x32xbf16>, vector<32x96xbf16>, vector<8x96xf32> -> vector<8x96xf32>
    %c0_4 = arith.constant 0 : index
    %c0_5 = arith.constant 0 : index
    %5 = vector.load %arg4[%c0_4, %c0_5] : memref<1x96xf32, #tpu.memory_space<vmem>>, vector<1x96xf32>
    %6 = vector.broadcast %5 : vector<1x96xf32> to vector<8x96xf32>
    %7 = arith.addf %4, %6 : vector<8x96xf32>
    %8 = vector.extract_strided_slice %7 {offsets = [0, 0], sizes = [8, 32], strides = [1, 1]} : vector<8x96xf32> to vector<8x32xf32>
    %9 = vector.extract_strided_slice %7 {offsets = [0, 32], sizes = [8, 32], strides = [1, 1]} : vector<8x96xf32> to vector<8x32xf32>
    %10 = vector.extract_strided_slice %7 {offsets = [0, 64], sizes = [8, 32], strides = [1, 1]} : vector<8x96xf32> to vector<8x32xf32>
    %c0_6 = arith.constant 0 : index
    %c0_7 = arith.constant 0 : index
    %c0_8 = arith.constant 0 : index
    %11 = vector.load %arg2[%c0_6, %c0_7, %c0_8] : memref<1x1x8xf32, #tpu.memory_space<vmem>>, vector<1x1x8xf32>
    %12 = vector.shape_cast %11 : vector<1x1x8xf32> to vector<1x8xf32>
    %cst_9 = arith.constant 1.000000e+00 : f32
    %13 = vector.broadcast %cst_9 : f32 to vector<1x8xf32>
    %14 = arith.subf %13, %12 : vector<1x8xf32>
    %cst_10 = arith.constant -1.000000e+04 : f32
    %15 = vector.broadcast %cst_10 : f32 to vector<1x8xf32>
    %16 = arith.mulf %14, %15 : vector<1x8xf32>
    %17 = vector.extract_strided_slice %8 {offsets = [0, 0], sizes = [8, 8], strides = [1, 1]} : vector<8x32xf32> to vector<8x8xf32>
    %18 = arith.truncf %17 : vector<8x8xf32> to vector<8x8xbf16>
    %19 = vector.extract_strided_slice %9 {offsets = [0, 0], sizes = [8, 8], strides = [1, 1]} : vector<8x32xf32> to vector<8x8xf32>
    %20 = arith.truncf %19 : vector<8x8xf32> to vector<8x8xbf16>
    %21 = vector.extract_strided_slice %10 {offsets = [0, 0], sizes = [8, 8], strides = [1, 1]} : vector<8x32xf32> to vector<8x8xf32>
    %22 = arith.truncf %21 : vector<8x8xf32> to vector<8x8xbf16>
    %23 = tpu.transpose %20, [1, 0] : vector<8x8xbf16> -> vector<8x8xbf16>
    %cst_11 = arith.constant dense<0.000000e+00> : vector<8x8xf32>
    %24 = tpu.matmul %18, %23, %cst_11 {dimension_numbers = #tpu.dot_dimension_numbers<[1], [0], [0], [1], [0, 0, 1, 1], [], []>} : vector<8x8xbf16>, vector<8x8xbf16>, vector<8x8xf32> -> vector<8x8xf32>
    %cst_12 = arith.constant 0.353553385 : f32
    %25 = vector.broadcast %cst_12 : f32 to vector<8x8xf32>
    %26 = arith.mulf %24, %25 : vector<8x8xf32>
    %27 = vector.broadcast %16 : vector<1x8xf32> to vector<8x8xf32>
    %28 = arith.addf %26, %27 : vector<8x8xf32>
    %cst_13 = arith.constant dense<0xFF800000> : vector<8xf32>
    %29 = vector.multi_reduction <maximumf>, %28, %cst_13 [1] : vector<8x8xf32> to vector<8xf32>
    %30 = vector.shape_cast %29 : vector<8xf32> to vector<8x1xf32>
    %31 = vector.broadcast %30 : vector<8x1xf32> to vector<8x8xf32>
    %32 = arith.subf %28, %31 : vector<8x8xf32>
    %33 = math.exp %32 : vector<8x8xf32>
    %cst_14 = arith.constant dense<0.000000e+00> : vector<8xf32>
    %34 = vector.multi_reduction <add>, %33, %cst_14 [1] : vector<8x8xf32> to vector<8xf32>
    %35 = vector.shape_cast %34 : vector<8xf32> to vector<8x1xf32>
    %36 = tpu.reciprocal %35 {approx = true} : vector<8x1xf32> -> vector<8x1xf32>
    %37 = vector.broadcast %36 : vector<8x1xf32> to vector<8x8xf32>
    %38 = arith.mulf %33, %37 : vector<8x8xf32>
    %39 = arith.truncf %38 : vector<8x8xf32> to vector<8x8xbf16>
    %cst_15 = arith.constant dense<0.000000e+00> : vector<8x8xf32>
    %40 = tpu.matmul %39, %22, %cst_15 {dimension_numbers = #tpu.dot_dimension_numbers<[1], [0], [0], [1], [0, 0, 1, 1], [], []>} : vector<8x8xbf16>, vector<8x8xbf16>, vector<8x8xf32> -> vector<8x8xf32>
    %41 = vector.extract_strided_slice %8 {offsets = [0, 8], sizes = [8, 8], strides = [1, 1]} : vector<8x32xf32> to vector<8x8xf32>
    %42 = arith.truncf %41 : vector<8x8xf32> to vector<8x8xbf16>
    %43 = vector.extract_strided_slice %9 {offsets = [0, 8], sizes = [8, 8], strides = [1, 1]} : vector<8x32xf32> to vector<8x8xf32>
    %44 = arith.truncf %43 : vector<8x8xf32> to vector<8x8xbf16>
    %45 = vector.extract_strided_slice %10 {offsets = [0, 8], sizes = [8, 8], strides = [1, 1]} : vector<8x32xf32> to vector<8x8xf32>
    %46 = arith.truncf %45 : vector<8x8xf32> to vector<8x8xbf16>
    %47 = tpu.transpose %44, [1, 0] : vector<8x8xbf16> -> vector<8x8xbf16>
    %cst_16 = arith.constant dense<0.000000e+00> : vector<8x8xf32>
    %48 = tpu.matmul %42, %47, %cst_16 {dimension_numbers = #tpu.dot_dimension_numbers<[1], [0], [0], [1], [0, 0, 1, 1], [], []>} : vector<8x8xbf16>, vector<8x8xbf16>, vector<8x8xf32> -> vector<8x8xf32>
    %cst_17 = arith.constant 0.353553385 : f32
    %49 = vector.broadcast %cst_17 : f32 to vector<8x8xf32>
    %50 = arith.mulf %48, %49 : vector<8x8xf32>
    %51 = vector.broadcast %16 : vector<1x8xf32> to vector<8x8xf32>
    %52 = arith.addf %50, %51 : vector<8x8xf32>
    %cst_18 = arith.constant dense<0xFF800000> : vector<8xf32>
    %53 = vector.multi_reduction <maximumf>, %52, %cst_18 [1] : vector<8x8xf32> to vector<8xf32>
    %54 = vector.shape_cast %53 : vector<8xf32> to vector<8x1xf32>
    %55 = vector.broadcast %54 : vector<8x1xf32> to vector<8x8xf32>
    %56 = arith.subf %52, %55 : vector<8x8xf32>
    %57 = math.exp %56 : vector<8x8xf32>
    %cst_19 = arith.constant dense<0.000000e+00> : vector<8xf32>
    %58 = vector.multi_reduction <add>, %57, %cst_19 [1] : vector<8x8xf32> to vector<8xf32>
    %59 = vector.shape_cast %58 : vector<8xf32> to vector<8x1xf32>
    %60 = tpu.reciprocal %59 {approx = true} : vector<8x1xf32> -> vector<8x1xf32>
    %61 = vector.broadcast %60 : vector<8x1xf32> to vector<8x8xf32>
    %62 = arith.mulf %57, %61 : vector<8x8xf32>
    %63 = arith.truncf %62 : vector<8x8xf32> to vector<8x8xbf16>
    %cst_20 = arith.constant dense<0.000000e+00> : vector<8x8xf32>
    %64 = tpu.matmul %63, %46, %cst_20 {dimension_numbers = #tpu.dot_dimension_numbers<[1], [0], [0], [1], [0, 0, 1, 1], [], []>} : vector<8x8xbf16>, vector<8x8xbf16>, vector<8x8xf32> -> vector<8x8xf32>
    %65 = vector.extract_strided_slice %8 {offsets = [0, 16], sizes = [8, 8], strides = [1, 1]} : vector<8x32xf32> to vector<8x8xf32>
    %66 = arith.truncf %65 : vector<8x8xf32> to vector<8x8xbf16>
    %67 = vector.extract_strided_slice %9 {offsets = [0, 16], sizes = [8, 8], strides = [1, 1]} : vector<8x32xf32> to vector<8x8xf32>
    %68 = arith.truncf %67 : vector<8x8xf32> to vector<8x8xbf16>
    %69 = vector.extract_strided_slice %10 {offsets = [0, 16], sizes = [8, 8], strides = [1, 1]} : vector<8x32xf32> to vector<8x8xf32>
    %70 = arith.truncf %69 : vector<8x8xf32> to vector<8x8xbf16>
    %71 = tpu.transpose %68, [1, 0] : vector<8x8xbf16> -> vector<8x8xbf16>
    %cst_21 = arith.constant dense<0.000000e+00> : vector<8x8xf32>
    %72 = tpu.matmul %66, %71, %cst_21 {dimension_numbers = #tpu.dot_dimension_numbers<[1], [0], [0], [1], [0, 0, 1, 1], [], []>} : vector<8x8xbf16>, vector<8x8xbf16>, vector<8x8xf32> -> vector<8x8xf32>
    %cst_22 = arith.constant 0.353553385 : f32
    %73 = vector.broadcast %cst_22 : f32 to vector<8x8xf32>
    %74 = arith.mulf %72, %73 : vector<8x8xf32>
    %75 = vector.broadcast %16 : vector<1x8xf32> to vector<8x8xf32>
    %76 = arith.addf %74, %75 : vector<8x8xf32>
    %cst_23 = arith.constant dense<0xFF800000> : vector<8xf32>
    %77 = vector.multi_reduction <maximumf>, %76, %cst_23 [1] : vector<8x8xf32> to vector<8xf32>
    %78 = vector.shape_cast %77 : vector<8xf32> to vector<8x1xf32>
    %79 = vector.broadcast %78 : vector<8x1xf32> to vector<8x8xf32>
    %80 = arith.subf %76, %79 : vector<8x8xf32>
    %81 = math.exp %80 : vector<8x8xf32>
    %cst_24 = arith.constant dense<0.000000e+00> : vector<8xf32>
    %82 = vector.multi_reduction <add>, %81, %cst_24 [1] : vector<8x8xf32> to vector<8xf32>
    %83 = vector.shape_cast %82 : vector<8xf32> to vector<8x1xf32>
    %84 = tpu.reciprocal %83 {approx = true} : vector<8x1xf32> -> vector<8x1xf32>
    %85 = vector.broadcast %84 : vector<8x1xf32> to vector<8x8xf32>
    %86 = arith.mulf %81, %85 : vector<8x8xf32>
    %87 = arith.truncf %86 : vector<8x8xf32> to vector<8x8xbf16>
    %cst_25 = arith.constant dense<0.000000e+00> : vector<8x8xf32>
    %88 = tpu.matmul %87, %70, %cst_25 {dimension_numbers = #tpu.dot_dimension_numbers<[1], [0], [0], [1], [0, 0, 1, 1], [], []>} : vector<8x8xbf16>, vector<8x8xbf16>, vector<8x8xf32> -> vector<8x8xf32>
    %89 = vector.extract_strided_slice %8 {offsets = [0, 24], sizes = [8, 8], strides = [1, 1]} : vector<8x32xf32> to vector<8x8xf32>
    %90 = arith.truncf %89 : vector<8x8xf32> to vector<8x8xbf16>
    %91 = vector.extract_strided_slice %9 {offsets = [0, 24], sizes = [8, 8], strides = [1, 1]} : vector<8x32xf32> to vector<8x8xf32>
    %92 = arith.truncf %91 : vector<8x8xf32> to vector<8x8xbf16>
    %93 = vector.extract_strided_slice %10 {offsets = [0, 24], sizes = [8, 8], strides = [1, 1]} : vector<8x32xf32> to vector<8x8xf32>
    %94 = arith.truncf %93 : vector<8x8xf32> to vector<8x8xbf16>
    %95 = tpu.transpose %92, [1, 0] : vector<8x8xbf16> -> vector<8x8xbf16>
    %cst_26 = arith.constant dense<0.000000e+00> : vector<8x8xf32>
    %96 = tpu.matmul %90, %95, %cst_26 {dimension_numbers = #tpu.dot_dimension_numbers<[1], [0], [0], [1], [0, 0, 1, 1], [], []>} : vector<8x8xbf16>, vector<8x8xbf16>, vector<8x8xf32> -> vector<8x8xf32>
    %cst_27 = arith.constant 0.353553385 : f32
    %97 = vector.broadcast %cst_27 : f32 to vector<8x8xf32>
    %98 = arith.mulf %96, %97 : vector<8x8xf32>
    %99 = vector.broadcast %16 : vector<1x8xf32> to vector<8x8xf32>
    %100 = arith.addf %98, %99 : vector<8x8xf32>
    %cst_28 = arith.constant dense<0xFF800000> : vector<8xf32>
    %101 = vector.multi_reduction <maximumf>, %100, %cst_28 [1] : vector<8x8xf32> to vector<8xf32>
    %102 = vector.shape_cast %101 : vector<8xf32> to vector<8x1xf32>
    %103 = vector.broadcast %102 : vector<8x1xf32> to vector<8x8xf32>
    %104 = arith.subf %100, %103 : vector<8x8xf32>
    %105 = math.exp %104 : vector<8x8xf32>
    %cst_29 = arith.constant dense<0.000000e+00> : vector<8xf32>
    %106 = vector.multi_reduction <add>, %105, %cst_29 [1] : vector<8x8xf32> to vector<8xf32>
    %107 = vector.shape_cast %106 : vector<8xf32> to vector<8x1xf32>
    %108 = tpu.reciprocal %107 {approx = true} : vector<8x1xf32> -> vector<8x1xf32>
    %109 = vector.broadcast %108 : vector<8x1xf32> to vector<8x8xf32>
    %110 = arith.mulf %105, %109 : vector<8x8xf32>
    %111 = arith.truncf %110 : vector<8x8xf32> to vector<8x8xbf16>
    %cst_30 = arith.constant dense<0.000000e+00> : vector<8x8xf32>
    %112 = tpu.matmul %111, %94, %cst_30 {dimension_numbers = #tpu.dot_dimension_numbers<[1], [0], [0], [1], [0, 0, 1, 1], [], []>} : vector<8x8xbf16>, vector<8x8xbf16>, vector<8x8xf32> -> vector<8x8xf32>
    %113 = tpu.concatenate %40, %64, %88, %112 in 1 : vector<8x8xf32>, vector<8x8xf32>, vector<8x8xf32>, vector<8x8xf32> -> vector<8x32xf32>
    %114 = arith.truncf %113 : vector<8x32xf32> to vector<8x32xbf16>
    %c0_31 = arith.constant 0 : index
    %c0_32 = arith.constant 0 : index
    %115 = vector.load %arg5[%c0_31, %c0_32] : memref<32x32xbf16, #tpu.memory_space<vmem>>, vector<32x32xbf16>
    %cst_33 = arith.constant dense<0.000000e+00> : vector<8x32xf32>
    %116 = tpu.matmul %114, %115, %cst_33 {dimension_numbers = #tpu.dot_dimension_numbers<[1], [0], [0], [1], [0, 0, 1, 1], [], []>} : vector<8x32xbf16>, vector<32x32xbf16>, vector<8x32xf32> -> vector<8x32xf32>
    %c0_34 = arith.constant 0 : index
    %c0_35 = arith.constant 0 : index
    %117 = vector.load %arg6[%c0_34, %c0_35] : memref<1x32xf32, #tpu.memory_space<vmem>>, vector<1x32xf32>
    %118 = vector.broadcast %117 : vector<1x32xf32> to vector<8x32xf32>
    %119 = arith.addf %116, %118 : vector<8x32xf32>
    %120 = arith.addf %119, %1 : vector<8x32xf32>
    %c0_36 = arith.constant 0 : index
    %c0_37 = arith.constant 0 : index
    %121 = vector.load %arg7[%c0_36, %c0_37] : memref<1x32xf32, #tpu.memory_space<vmem>>, vector<1x32xf32>
    %c0_38 = arith.constant 0 : index
    %c0_39 = arith.constant 0 : index
    %122 = vector.load %arg8[%c0_38, %c0_39] : memref<1x32xf32, #tpu.memory_space<vmem>>, vector<1x32xf32>
    %cst_40 = arith.constant dense<0.000000e+00> : vector<8xf32>
    %123 = vector.multi_reduction <add>, %120, %cst_40 [1] : vector<8x32xf32> to vector<8xf32>
    %124 = vector.shape_cast %123 : vector<8xf32> to vector<8x1xf32>
    %cst_41 = arith.constant 3.200000e+01 : f32
    %125 = vector.broadcast %cst_41 : f32 to vector<8x1xf32>
    %126 = arith.divf %124, %125 : vector<8x1xf32>
    %127 = vector.broadcast %126 : vector<8x1xf32> to vector<8x32xf32>
    %128 = arith.subf %120, %127 : vector<8x32xf32>
    %129 = arith.mulf %128, %128 : vector<8x32xf32>
    %cst_42 = arith.constant dense<0.000000e+00> : vector<8xf32>
    %130 = vector.multi_reduction <add>, %129, %cst_42 [1] : vector<8x32xf32> to vector<8xf32>
    %131 = vector.shape_cast %130 : vector<8xf32> to vector<8x1xf32>
    %cst_43 = arith.constant 3.200000e+01 : f32
    %132 = vector.broadcast %cst_43 : f32 to vector<8x1xf32>
    %133 = arith.divf %131, %132 : vector<8x1xf32>
    %134 = vector.broadcast %126 : vector<8x1xf32> to vector<8x32xf32>
    %135 = arith.subf %120, %134 : vector<8x32xf32>
    %cst_44 = arith.constant 9.99999996E-13 : f32
    %136 = vector.broadcast %cst_44 : f32 to vector<8x1xf32>
    %137 = arith.addf %133, %136 : vector<8x1xf32>
    %138 = math.rsqrt %137 : vector<8x1xf32>
    %139 = vector.broadcast %138 : vector<8x1xf32> to vector<8x32xf32>
    %140 = arith.mulf %135, %139 : vector<8x32xf32>
    %141 = vector.broadcast %121 : vector<1x32xf32> to vector<8x32xf32>
    %142 = arith.mulf %140, %141 : vector<8x32xf32>
    %143 = vector.broadcast %122 : vector<1x32xf32> to vector<8x32xf32>
    %144 = arith.addf %142, %143 : vector<8x32xf32>
    %145 = arith.truncf %144 : vector<8x32xf32> to vector<8x32xbf16>
    %c0_45 = arith.constant 0 : index
    %c0_46 = arith.constant 0 : index
    %146 = vector.load %arg9[%c0_45, %c0_46] : memref<32x64xbf16, #tpu.memory_space<vmem>>, vector<32x64xbf16>
    %cst_47 = arith.constant dense<0.000000e+00> : vector<8x64xf32>
    %147 = tpu.matmul %145, %146, %cst_47 {dimension_numbers = #tpu.dot_dimension_numbers<[1], [0], [0], [1], [0, 0, 1, 1], [], []>} : vector<8x32xbf16>, vector<32x64xbf16>, vector<8x64xf32> -> vector<8x64xf32>
    %c0_48 = arith.constant 0 : index
    %c0_49 = arith.constant 0 : index
    %148 = vector.load %arg10[%c0_48, %c0_49] : memref<1x64xf32, #tpu.memory_space<vmem>>, vector<1x64xf32>
    %149 = vector.broadcast %148 : vector<1x64xf32> to vector<8x64xf32>
    %150 = arith.addf %147, %149 : vector<8x64xf32>
    %cst_50 = arith.constant 5.000000e-01 : f32
    %151 = vector.broadcast %cst_50 : f32 to vector<8x64xf32>
    %152 = arith.mulf %151, %150 : vector<8x64xf32>
    %cst_51 = arith.constant 0.707106769 : f32
    %153 = vector.broadcast %cst_51 : f32 to vector<8x64xf32>
    %154 = arith.mulf %150, %153 : vector<8x64xf32>
    %155 = math.erf %154 : vector<8x64xf32>
    %cst_52 = arith.constant 1.000000e+00 : f32
    %156 = vector.broadcast %cst_52 : f32 to vector<8x64xf32>
    %157 = arith.addf %156, %155 : vector<8x64xf32>
    %158 = arith.mulf %152, %157 : vector<8x64xf32>
    %159 = arith.truncf %158 : vector<8x64xf32> to vector<8x64xbf16>
    %c0_53 = arith.constant 0 : index
    %c0_54 = arith.constant 0 : index
    %160 = vector.load %arg11[%c0_53, %c0_54] : memref<64x32xbf16, #tpu.memory_space<vmem>>, vector<64x32xbf16>
    %cst_55 = arith.constant dense<0.000000e+00> : vector<8x32xf32>
    %161 = tpu.matmul %159, %160, %cst_55 {dimension_numbers = #tpu.dot_dimension_numbers<[1], [0], [0], [1], [0, 0, 1, 1], [], []>} : vector<8x64xbf16>, vector<64x32xbf16>, vector<8x32xf32> -> vector<8x32xf32>
    %c0_56 = arith.constant 0 : index
    %c0_57 = arith.constant 0 : index
    %162 = vector.load %arg12[%c0_56, %c0_57] : memref<1x32xf32, #tpu.memory_space<vmem>>, vector<1x32xf32>
    %163 = vector.broadcast %162 : vector<1x32xf32> to vector<8x32xf32>
    %164 = arith.addf %161, %163 : vector<8x32xf32>
    %165 = arith.addf %164, %144 : vector<8x32xf32>
    %c0_58 = arith.constant 0 : index
    %c0_59 = arith.constant 0 : index
    %166 = vector.load %arg13[%c0_58, %c0_59] : memref<1x32xf32, #tpu.memory_space<vmem>>, vector<1x32xf32>
    %c0_60 = arith.constant 0 : index
    %c0_61 = arith.constant 0 : index
    %167 = vector.load %arg14[%c0_60, %c0_61] : memref<1x32xf32, #tpu.memory_space<vmem>>, vector<1x32xf32>
    %cst_62 = arith.constant dense<0.000000e+00> : vector<8xf32>
    %168 = vector.multi_reduction <add>, %165, %cst_62 [1] : vector<8x32xf32> to vector<8xf32>
    %169 = vector.shape_cast %168 : vector<8xf32> to vector<8x1xf32>
    %cst_63 = arith.constant 3.200000e+01 : f32
    %170 = vector.broadcast %cst_63 : f32 to vector<8x1xf32>
    %171 = arith.divf %169, %170 : vector<8x1xf32>
    %172 = vector.broadcast %171 : vector<8x1xf32> to vector<8x32xf32>
    %173 = arith.subf %165, %172 : vector<8x32xf32>
    %174 = arith.mulf %173, %173 : vector<8x32xf32>
    %cst_64 = arith.constant dense<0.000000e+00> : vector<8xf32>
    %175 = vector.multi_reduction <add>, %174, %cst_64 [1] : vector<8x32xf32> to vector<8xf32>
    %176 = vector.shape_cast %175 : vector<8xf32> to vector<8x1xf32>
    %cst_65 = arith.constant 3.200000e+01 : f32
    %177 = vector.broadcast %cst_65 : f32 to vector<8x1xf32>
    %178 = arith.divf %176, %177 : vector<8x1xf32>
    %179 = vector.broadcast %171 : vector<8x1xf32> to vector<8x32xf32>
    %180 = arith.subf %165, %179 : vector<8x32xf32>
    %cst_66 = arith.constant 9.99999996E-13 : f32
    %181 = vector.broadcast %cst_66 : f32 to vector<8x1xf32>
    %182 = arith.addf %178, %181 : vector<8x1xf32>
    %183 = math.rsqrt %182 : vector<8x1xf32>
    %184 = vector.broadcast %183 : vector<8x1xf32> to vector<8x32xf32>
    %185 = arith.mulf %180, %184 : vector<8x32xf32>
    %186 = vector.broadcast %166 : vector<1x32xf32> to vector<8x32xf32>
    %187 = arith.mulf %185, %186 : vector<8x32xf32>
    %188 = vector.broadcast %167 : vector<1x32xf32> to vector<8x32xf32>
    %189 = arith.addf %187, %188 : vector<8x32xf32>
    %c0_67 = arith.constant 0 : index
    %c0_68 = arith.constant 0 : index
    %c0_69 = arith.constant 0 : index
    %190 = vector.load %arg15[%c0_67, %c0_68, %c0_69] : memref<1x8x32xf32, #tpu.memory_space<vmem>>, vector<1x8x32xf32>
    %191 = vector.shape_cast %190 : vector<1x8x32xf32> to vector<8x32xf32>
    %192 = vector.shape_cast %189 : vector<8x32xf32> to vector<1x8x32xf32>
    tpu.vector_store %arg15[%c0_67, %c0_68, %c0_69], %192 {strides = array<i32>} : memref<1x8x32xf32, #tpu.memory_space<vmem>>, vector<1x8x32xf32>,
    return
  }
  func.func @transform_0(%arg0: i32) -> (i32, i32, i32) {
    %c0_i32 = arith.constant 0 : i32
    %c0_i32_0 = arith.constant 0 : i32
    %c0_i32_1 = arith.constant 0 : i32
    return %arg0, %c0_i32, %c0_i32_0 : i32, i32, i32
  }
  func.func @transform_1(%arg0: i32) -> (i32, i32, i32) {
    %c0_i32 = arith.constant 0 : i32
    %c0_i32_0 = arith.constant 0 : i32
    %c0_i32_1 = arith.constant 0 : i32
    return %arg0, %c0_i32, %c0_i32_0 : i32, i32, i32
  }
  func.func @transform_2(%arg0: i32) -> (i32, i32) {
    %c0_i32 = arith.constant 0 : i32
    %c0_i32_0 = arith.constant 0 : i32
    %c0_i32_1 = arith.constant 0 : i32
    return %c0_i32, %c0_i32_0 : i32, i32
  }
  func.func @transform_3(%arg0: i32) -> (i32, i32) {
    %c0_i32 = arith.constant 0 : i32
    %c0_i32_0 = arith.constant 0 : i32
    %c0_i32_1 = arith.constant 0 : i32
    return %c0_i32, %c0_i32_0 : i32, i32
  }
  func.func @transform_4(%arg0: i32) -> (i32, i32) {
    %c0_i32 = arith.constant 0 : i32
    %c0_i32_0 = arith.constant 0 : i32
    %c0_i32_1 = arith.constant 0 : i32
    return %c0_i32, %c0_i32_0 : i32, i32
  }
  func.func @transform_5(%arg0: i32) -> (i32, i32) {
    %c0_i32 = arith.constant 0 : i32
    %c0_i32_0 = arith.constant 0 : i32
    %c0_i32_1 = arith.constant 0 : i32
    return %c0_i32, %c0_i32_0 : i32, i32
  }
  func.func @transform_6(%arg0: i32) -> (i32, i32) {
    %c0_i32 = arith.constant 0 : i32
    %c0_i32_0 = arith.constant 0 : i32
    %c0_i32_1 = arith.constant 0 : i32
    return %c0_i32, %c0_i32_0 : i32, i32
  }
  func.func @transform_7(%arg0: i32) -> (i32, i32) {
    %c0_i32 = arith.constant 0 : i32
    %c0_i32_0 = arith.constant 0 : i32
    %c0_i32_1 = arith.constant 0 : i32
    return %c0_i32, %c0_i32_0 : i32, i32
  }
  func.func @transform_8(%arg0: i32) -> (i32, i32) {
    %c0_i32 = arith.constant 0 : i32
    %c0_i32_0 = arith.constant 0 : i32
    %c0_i32_1 = arith.constant 0 : i32
    return %c0_i32, %c0_i32_0 : i32, i32
  }
  func.func @transform_9(%arg0: i32) -> (i32, i32) {
    %c0_i32 = arith.constant 0 : i32
    %c0_i32_0 = arith.constant 0 : i32
    %c0_i32_1 = arith.constant 0 : i32
    return %c0_i32, %c0_i32_0 : i32, i32
  }
  func.func @transform_10(%arg0: i32) -> (i32, i32) {
    %c0_i32 = arith.constant 0 : i32
    %c0_i32_0 = arith.constant 0 : i32
    %c0_i32_1 = arith.constant 0 : i32
    return %c0_i32, %c0_i32_0 : i32, i32
  }
  func.func @transform_11(%arg0: i32) -> (i32, i32) {
    %c0_i32 = arith.constant 0 : i32
    %c0_i32_0 = arith.constant 0 : i32
    %c0_i32_1 = arith.constant 0 : i32
    return %c0_i32, %c0_i32_0 : i32, i32
  }
  func.func @transform_12(%arg0: i32) -> (i32, i32) {
    %c0_i32 = arith.constant 0 : i32
    %c0_i32_0 = arith.constant 0 : i32
    %c0_i32_1 = arith.constant 0 : i32
    return %c0_i32, %c0_i32_0 : i32, i32
  }
  func.func @transform_13(%arg0: i32) -> (i32, i32) {
    %c0_i32 = arith.constant 0 : i32
    %c0_i32_0 = arith.constant 0 : i32
    %c0_i32_1 = arith.constant 0 : i32
    return %c0_i32, %c0_i32_0 : i32, i32
  }
  func.func @transform_14(%arg0: i32) -> (i32, i32, i32) {
    %c0_i32 = arith.constant 0 : i32
    %c0_i32_0 = arith.constant 0 : i32
    %c0_i32_1 = arith.constant 0 : i32
    return %arg0, %c0_i32, %c0_i32_0 : i32, i32, i32
  }
}

</mosaic_0001>

<llo_original>
// kernel: tpu_custom_call.1
$region0: #{tpu_custom_call.1}
  #allocation0 [shape = 'u32[]', space=smem, size = 0x4, offset = 0x4, fixed_abs, tag = 'smem constant byte address 0x4 - core index']
  #allocation1 [shape = 'u32[72,128]{1,0:T(1,128)}', space=vmem, size = 0x9000, scoped, tag = 'internal scratch']
  %s0 = inlined_call_operand.vmem [shape: f32[2,8,32], index: 0, kind: input, shape index: {}]
  %s1 = inlined_call_operand.hbm [shape: f32[2,1,8], index: 1, kind: input, shape index: {}]
  %s2 = inlined_call_operand.vmem [shape: bf16[32,96], index: 2, kind: input, shape index: {}]
  %s3 = inlined_call_operand.vmem [shape: f32[1,96], index: 3, kind: input, shape index: {}]
  %s4 = inlined_call_operand.vmem [shape: bf16[32,32], index: 4, kind: input, shape index: {}]
  %s5 = inlined_call_operand.vmem [shape: f32[1,32], index: 5, kind: input, shape index: {}]
  %s6 = inlined_call_operand.vmem [shape: f32[1,32], index: 6, kind: input, shape index: {}]
  %s7 = inlined_call_operand.vmem [shape: f32[1,32], index: 7, kind: input, shape index: {}]
  %s8 = inlined_call_operand.hbm [shape: bf16[32,64], index: 8, kind: input, shape index: {}]
  %s9 = inlined_call_operand.vmem [shape: f32[1,64], index: 9, kind: input, shape index: {}]
  %s10 = inlined_call_operand.vmem [shape: bf16[64,32], index: 10, kind: input, shape index: {}]
  %s11 = inlined_call_operand.vmem [shape: f32[1,32], index: 11, kind: input, shape index: {}]
  %s12 = inlined_call_operand.vmem [shape: f32[1,32], index: 12, kind: input, shape index: {}]
  %s13 = inlined_call_operand.vmem [shape: f32[1,32], index: 13, kind: input, shape index: {}]
  %s14 = inlined_call_operand.hbm [shape: f32[2,8,32], index: 14, kind: output, shape index: {}]
  %s15 = sld [smem:[#allocation0]]
  $region97: #{tpu_custom_call.1} parent=0
    _
  %s17 = ssub.s32 1, %s15
  %s18 = scalar_select 0, %s17, %s15
  $region1: #{tpu_custom_call.1} parent=0
    #allocation2 [shape = 'u8[1024]{0}', space=vmem, size = 0x400, scoped, tag = 'input window, operand 1']
    #allocation3 [shape = 's32[2]{0}', space=sflag, size = 0x8, scoped, tag = 'scoped memory for tpu_custom_call.1']
    #allocation4 [shape = 's32[2]{0}', space=sflag, size = 0x8, scoped, tag = 'scoped memory for tpu_custom_call.1']
    #allocation5 [shape = 'u8[8192]{0}', space=vmem, size = 0x2000, scoped, tag = 'input window, operand 8, single buffered']
    #allocation6 [shape = 's32[1]{0}', space=sflag, size = 0x4, scoped, tag = 'scoped memory for tpu_custom_call.1']
    #allocation7 [shape = 'u8[8192]{0}', space=vmem, size = 0x2000, scoped, tag = 'output window, operand 0']
    %19 = vsyncpa [#allocation3], 0
    %s20 = scalar_lea.sflag [#allocation3], 1
    %21 = vsyncpa %s20, 0
    %22 = vsyncpa [#allocation6], 0
    %23 = vsyncpa [#allocation4], 0
    %s24 = scalar_lea.sflag [#allocation4], 1
    %25 = vsyncpa %s24, 0
    loop: start=0, step=1, limit=4
    $region2: #{tpu_custom_call.1} parent=1 // loop_pre_header
      _
    $region3: #{tpu_custom_call.1} parent=1 // loop_header
      %s27 = sphi 0, %s31
      %p28 = scmp.ge.s32.totalorder %s27, 4
      %s37 = sphi 0, %s39
      %s40 = sphi 0, %s37
      %s41 = sphi 0, %s40
      %s57 = sphi 0, %s41
      %s63 = sphi 0, %s65
      %s66 = sphi 0, %s63
      %s67 = sphi 0, %s66
      %s83 = sphi 0, %s67
      %s87 = sphi 0, %s87
      %s89 = sphi 0, %s87
      %s90 = sphi 0, %s89
      %s104 = sphi 0, %s90
      %s108 = sphi 0, %s108
      %s110 = sphi 0, %s108
      %s111 = sphi 0, %s110
      %s125 = sphi 0, %s111
      %s129 = sphi 0, %s129
      %s131 = sphi 0, %s129
      %s132 = sphi 0, %s131
      %s146 = sphi 0, %s132
      %s150 = sphi 0, %s150
      %s152 = sphi 0, %s150
      %s153 = sphi 0, %s152
      %s167 = sphi 0, %s153
      %s171 = sphi 0, %s171
      %s173 = sphi 0, %s171
      %s174 = sphi 0, %s173
      %s188 = sphi 0, %s174
      %s192 = sphi 0, %s192
      %s194 = sphi 0, %s192
      %s195 = sphi 0, %s194
      %s209 = sphi 0, %s195
      %s213 = sphi 0, %s213
      %s215 = sphi 0, %s213
      %s216 = sphi 0, %s215
      %s230 = sphi 0, %s216
      %s234 = sphi 0, %s234
      %s236 = sphi 0, %s234
      %s237 = sphi 0, %s236
      %s251 = sphi 0, %s237
      %s255 = sphi 0, %s255
      %s257 = sphi 0, %s255
      %s258 = sphi 0, %s257
      %s272 = sphi 0, %s258
      %s276 = sphi 0, %s276
      %s278 = sphi 0, %s276
      %s279 = sphi 0, %s278
      %s293 = sphi 0, %s279
      %s297 = sphi 0, %s297
      %s299 = sphi 0, %s297
      %s300 = sphi 0, %s299
      %s314 = sphi 0, %s300
      %s318 = sphi 0, %s318
      %s320 = sphi 0, %s318
      %s321 = sphi 0, %s320
      %s335 = sphi 0, %s321
      %s341 = sphi 0, %s343
      %s344 = sphi 0, %s341
      %s345 = sphi 0, %s344
      %s361 = sphi 0, %s345
    $region4: #{tpu_custom_call.1} parent=1 // loop_header_branch
      %30 = sbr.rel (%p28) target = $region8
    $region5: #{tpu_custom_call.1} parent=1 // loop_body
      %s32 = ssub.s32 %s27, 1
      %s33 = ssub.s32 %s27, 2
      %s34 = sadd.s32 %s27, 1
      %s35 = ssub.s32 %s27, %s34
      %p36 = scmp.eq.s32.totalorder %s35, 0
      %s38 = sadd.s32 %s37, 1
      %s39 = scalar_select %p36, %s37, %s38
      %p42 = pneg %p36
      %p43 = scmp.eq.s32.totalorder %s27, 1
      %p44 = por %p42, %p43
      %p45 = scmp.ne.s32.totalorder %s37, %s40
      %p46 = scmp.eq.s32.totalorder %s27, 0
      %p47 = por %p45, %p46
      %p48 = scmp.ne.s32.totalorder %s37, %s40
      %p49 = scmp.eq.s32.totalorder %s32, 1
      %p50 = por %p48, %p49
      %p51 = scmp.ne.s32.totalorder %s40, %s41
      %p52 = scmp.eq.s32.totalorder %s32, 0
      %p53 = por %p51, %p52
      %p54 = scmp.ne.s32.totalorder %s40, %s41
      %p55 = scmp.eq.s32.totalorder %s33, 1
      %p56 = por %p54, %p55
      %p58 = scmp.ne.s32.totalorder %s41, %s57
      %p59 = scmp.eq.s32.totalorder %s33, 0
      %p60 = por %p58, %p59
      %s61 = ssub.s32 %s27, %s34
      %p62 = scmp.eq.s32.totalorder %s61, 0
      %s64 = sadd.s32 %s63, 1
      %s65 = scalar_select %p62, %s63, %s64
      %p68 = pneg %p62
      %p69 = scmp.eq.s32.totalorder %s27, 1
      %p70 = por %p68, %p69
      %p71 = scmp.ne.s32.totalorder %s63, %s66
      %p72 = scmp.eq.s32.totalorder %s27, 0
      %p73 = por %p71, %p72
      %p74 = scmp.ne.s32.totalorder %s63, %s66
      %p75 = scmp.eq.s32.totalorder %s32, 1
      %p76 = por %p74, %p75
      %p77 = scmp.ne.s32.totalorder %s66, %s67
      %p78 = scmp.eq.s32.totalorder %s32, 0
      %p79 = por %p77, %p78
      %p80 = scmp.ne.s32.totalorder %s66, %s67
      %p81 = scmp.eq.s32.totalorder %s33, 1
      %p82 = por %p80, %p81
      %p84 = scmp.ne.s32.totalorder %s67, %s83
      %p85 = scmp.eq.s32.totalorder %s33, 0
      %p86 = por %p84, %p85
      %s88 = sadd.s32 %s87, 1
      %p91 = scmp.eq.s32.totalorder %s27, 1
      %p92 = scmp.ne.s32.totalorder %s87, %s89
      %p93 = scmp.eq.s32.totalorder %s27, 0
      %p94 = por %p92, %p93
      %p95 = scmp.ne.s32.totalorder %s87, %s89
      %p96 = scmp.eq.s32.totalorder %s32, 1
      %p97 = por %p95, %p96
      %p98 = scmp.ne.s32.totalorder %s89, %s90
      %p99 = scmp.eq.s32.totalorder %s32, 0
      %p100 = por %p98, %p99
      %p101 = scmp.ne.s32.totalorder %s89, %s90
      %p102 = scmp.eq.s32.totalorder %s33, 1
      %p103 = por %p101, %p102
      %p105 = scmp.ne.s32.totalorder %s90, %s104
      %p106 = scmp.eq.s32.totalorder %s33, 0
      %p107 = por %p105, %p106
      %s109 = sadd.s32 %s108, 1
      %p112 = scmp.eq.s32.totalorder %s27, 1
      %p113 = scmp.ne.s32.totalorder %s108, %s110
      %p114 = scmp.eq.s32.totalorder %s27, 0
      %p115 = por %p113, %p114
      %p116 = scmp.ne.s32.totalorder %s108, %s110
      %p117 = scmp.eq.s32.totalorder %s32, 1
      %p118 = por %p116, %p117
      %p119 = scmp.ne.s32.totalorder %s110, %s111
      %p120 = scmp.eq.s32.totalorder %s32, 0
      %p121 = por %p119, %p120
      %p122 = scmp.ne.s32.totalorder %s110, %s111
      %p123 = scmp.eq.s32.totalorder %s33, 1
      %p124 = por %p122, %p123
      %p126 = scmp.ne.s32.totalorder %s111, %s125
      %p127 = scmp.eq.s32.totalorder %s33, 0
      %p128 = por %p126, %p127
      %s130 = sadd.s32 %s129, 1
      %p133 = scmp.eq.s32.totalorder %s27, 1
      %p134 = scmp.ne.s32.totalorder %s129, %s131
      %p135 = scmp.eq.s32.totalorder %s27, 0
      %p136 = por %p134, %p135
      %p137 = scmp.ne.s32.totalorder %s129, %s131
      %p138 = scmp.eq.s32.totalorder %s32, 1
      %p139 = por %p137, %p138
      %p140 = scmp.ne.s32.totalorder %s131, %s132
      %p141 = scmp.eq.s32.totalorder %s32, 0
      %p142 = por %p140, %p141
      %p143 = scmp.ne.s32.totalorder %s131, %s132
      %p144 = scmp.eq.s32.totalorder %s33, 1
      %p145 = por %p143, %p144
      %p147 = scmp.ne.s32.totalorder %s132, %s146
      %p148 = scmp.eq.s32.totalorder %s33, 0
      %p149 = por %p147, %p148
      %s151 = sadd.s32 %s150, 1
      %p154 = scmp.eq.s32.totalorder %s27, 1
      %p155 = scmp.ne.s32.totalorder %s150, %s152
      %p156 = scmp.eq.s32.totalorder %s27, 0
      %p157 = por %p155, %p156
      %p158 = scmp.ne.s32.totalorder %s150, %s152
      %p159 = scmp.eq.s32.totalorder %s32, 1
      %p160 = por %p158, %p159
      %p161 = scmp.ne.s32.totalorder %s152, %s153
      %p162 = scmp.eq.s32.totalorder %s32, 0
      %p163 = por %p161, %p162
      %p164 = scmp.ne.s32.totalorder %s152, %s153
      %p165 = scmp.eq.s32.totalorder %s33, 1
      %p166 = por %p164, %p165
      %p168 = scmp.ne.s32.totalorder %s153, %s167
      %p169 = scmp.eq.s32.totalorder %s33, 0
      %p170 = por %p168, %p169
      %s172 = sadd.s32 %s171, 1
      %p175 = scmp.eq.s32.totalorder %s27, 1
      %p176 = scmp.ne.s32.totalorder %s171, %s173
      %p177 = scmp.eq.s32.totalorder %s27, 0
      %p178 = por %p176, %p177
      %p179 = scmp.ne.s32.totalorder %s171, %s173
      %p180 = scmp.eq.s32.totalorder %s32, 1
      %p181 = por %p179, %p180
      %p182 = scmp.ne.s32.totalorder %s173, %s174
      %p183 = scmp.eq.s32.totalorder %s32, 0
      %p184 = por %p182, %p183
      %p185 = scmp.ne.s32.totalorder %s173, %s174
      %p186 = scmp.eq.s32.totalorder %s33, 1
      %p187 = por %p185, %p186
      %p189 = scmp.ne.s32.totalorder %s174, %s188
      %p190 = scmp.eq.s32.totalorder %s33, 0
      %p191 = por %p189, %p190
      %s193 = sadd.s32 %s192, 1
      %p196 = scmp.eq.s32.totalorder %s27, 1
      %p197 = scmp.ne.s32.totalorder %s192, %s194
      %p198 = scmp.eq.s32.totalorder %s27, 0
      %p199 = por %p197, %p198
      %p200 = scmp.ne.s32.totalorder %s192, %s194
      %p201 = scmp.eq.s32.totalorder %s32, 1
      %p202 = por %p200, %p201
      %p203 = scmp.ne.s32.totalorder %s194, %s195
      %p204 = scmp.eq.s32.totalorder %s32, 0
      %p205 = por %p203, %p204
      %p206 = scmp.ne.s32.totalorder %s194, %s195
      %p207 = scmp.eq.s32.totalorder %s33, 1
      %p208 = por %p206, %p207
      %p210 = scmp.ne.s32.totalorder %s195, %s209
      %p211 = scmp.eq.s32.totalorder %s33, 0
      %p212 = por %p210, %p211
      %s214 = sadd.s32 %s213, 1
      %p217 = scmp.eq.s32.totalorder %s27, 1
      %p218 = scmp.ne.s32.totalorder %s213, %s215
      %p219 = scmp.eq.s32.totalorder %s27, 0
      %p220 = por %p218, %p219
      %p221 = scmp.ne.s32.totalorder %s213, %s215
      %p222 = scmp.eq.s32.totalorder %s32, 1
      %p223 = por %p221, %p222
      %p224 = scmp.ne.s32.totalorder %s215, %s216
      %p225 = scmp.eq.s32.totalorder %s32, 0
      %p226 = por %p224, %p225
      %p227 = scmp.ne.s32.totalorder %s215, %s216
      %p228 = scmp.eq.s32.totalorder %s33, 1
      %p229 = por %p227, %p228
      %p231 = scmp.ne.s32.totalorder %s216, %s230
      %p232 = scmp.eq.s32.totalorder %s33, 0
      %p233 = por %p231, %p232
      %s235 = sadd.s32 %s234, 1
      %p238 = scmp.eq.s32.totalorder %s27, 1
      %p239 = scmp.ne.s32.totalorder %s234, %s236
      %p240 = scmp.eq.s32.totalorder %s27, 0
      %p241 = por %p239, %p240
      %p242 = scmp.ne.s32.totalorder %s234, %s236
      %p243 = scmp.eq.s32.totalorder %s32, 1
      %p244 = por %p242, %p243
      %p245 = scmp.ne.s32.totalorder %s236, %s237
      %p246 = scmp.eq.s32.totalorder %s32, 0
      %p247 = por %p245, %p246
      %p248 = scmp.ne.s32.totalorder %s236, %s237
      %p249 = scmp.eq.s32.totalorder %s33, 1
      %p250 = por %p248, %p249
      %p252 = scmp.ne.s32.totalorder %s237, %s251
      %p253 = scmp.eq.s32.totalorder %s33, 0
      %p254 = por %p252, %p253
      %s256 = sadd.s32 %s255, 1
      %p259 = scmp.eq.s32.totalorder %s27, 1
      %p260 = scmp.ne.s32.totalorder %s255, %s257
      %p261 = scmp.eq.s32.totalorder %s27, 0
      %p262 = por %p260, %p261
      %p263 = scmp.ne.s32.totalorder %s255, %s257
      %p264 = scmp.eq.s32.totalorder %s32, 1
      %p265 = por %p263, %p264
      %p266 = scmp.ne.s32.totalorder %s257, %s258
      %p267 = scmp.eq.s32.totalorder %s32, 0
      %p268 = por %p266, %p267
      %p269 = scmp.ne.s32.totalorder %s257, %s258
      %p270 = scmp.eq.s32.totalorder %s33, 1
      %p271 = por %p269, %p270
      %p273 = scmp.ne.s32.totalorder %s258, %s272
      %p274 = scmp.eq.s32.totalorder %s33, 0
      %p275 = por %p273, %p274
      %s277 = sadd.s32 %s276, 1
      %p280 = scmp.eq.s32.totalorder %s27, 1
      %p281 = scmp.ne.s32.totalorder %s276, %s278
      %p282 = scmp.eq.s32.totalorder %s27, 0
      %p283 = por %p281, %p282
      %p284 = scmp.ne.s32.totalorder %s276, %s278
      %p285 = scmp.eq.s32.totalorder %s32, 1
      %p286 = por %p284, %p285
      %p287 = scmp.ne.s32.totalorder %s278, %s279
      %p288 = scmp.eq.s32.totalorder %s32, 0
      %p289 = por %p287, %p288
      %p290 = scmp.ne.s32.totalorder %s278, %s279
      %p291 = scmp.eq.s32.totalorder %s33, 1
      %p292 = por %p290, %p291
      %p294 = scmp.ne.s32.totalorder %s279, %s293
      %p295 = scmp.eq.s32.totalorder %s33, 0
      %p296 = por %p294, %p295
      %s298 = sadd.s32 %s297, 1
      %p301 = scmp.eq.s32.totalorder %s27, 1
      %p302 = scmp.ne.s32.totalorder %s297, %s299
      %p303 = scmp.eq.s32.totalorder %s27, 0
      %p304 = por %p302, %p303
      %p305 = scmp.ne.s32.totalorder %s297, %s299
      %p306 = scmp.eq.s32.totalorder %s32, 1
      %p307 = por %p305, %p306
      %p308 = scmp.ne.s32.totalorder %s299, %s300
      %p309 = scmp.eq.s32.totalorder %s32, 0
      %p310 = por %p308, %p309
      %p311 = scmp.ne.s32.totalorder %s299, %s300
      %p312 = scmp.eq.s32.totalorder %s33, 1
      %p313 = por %p311, %p312
      %p315 = scmp.ne.s32.totalorder %s300, %s314
      %p316 = scmp.eq.s32.totalorder %s33, 0
      %p317 = por %p315, %p316
      %s319 = sadd.s32 %s318, 1
      %p322 = scmp.eq.s32.totalorder %s27, 1
      %p323 = scmp.ne.s32.totalorder %s318, %s320
      %p324 = scmp.eq.s32.totalorder %s27, 0
      %p325 = por %p323, %p324
      %p326 = scmp.ne.s32.totalorder %s318, %s320
      %p327 = scmp.eq.s32.totalorder %s32, 1
      %p328 = por %p326, %p327
      %p329 = scmp.ne.s32.totalorder %s320, %s321
      %p330 = scmp.eq.s32.totalorder %s32, 0
      %p331 = por %p329, %p330
      %p332 = scmp.ne.s32.totalorder %s320, %s321
      %p333 = scmp.eq.s32.totalorder %s33, 1
      %p334 = por %p332, %p333
      %p336 = scmp.ne.s32.totalorder %s321, %s335
      %p337 = scmp.eq.s32.totalorder %s33, 0
      %p338 = por %p336, %p337
      %s339 = ssub.s32 %s27, %s34
      %p340 = scmp.eq.s32.totalorder %s339, 0
      %s342 = sadd.s32 %s341, 1
      %s343 = scalar_select %p340, %s341, %s342
      %p346 = pneg %p340
      %p347 = scmp.eq.s32.totalorder %s27, 1
      %p348 = por %p346, %p347
      %p349 = scmp.ne.s32.totalorder %s341, %s344
      %p350 = scmp.eq.s32.totalorder %s27, 0
      %p351 = por %p349, %p350
      %p352 = scmp.ne.s32.totalorder %s341, %s344
      %p353 = scmp.eq.s32.totalorder %s32, 1
      %p354 = por %p352, %p353
      %p355 = scmp.ne.s32.totalorder %s344, %s345
      %p356 = scmp.eq.s32.totalorder %s32, 0
      %p357 = por %p355, %p356
      %p358 = scmp.ne.s32.totalorder %s344, %s345
      %p359 = scmp.eq.s32.totalorder %s33, 1
      %p360 = por %p358, %p359
      %p362 = scmp.ne.s32.totalorder %s345, %s361
      %p363 = scmp.eq.s32.totalorder %s33, 0
      %p364 = por %p362, %p363
      %p365 = scmp.le.s32.totalorder 1, %s27
      %p366 = scmp.lt.s32.totalorder %s27, 3
      %p367 = pnand %p365, %p366
      %p368 = pneg %p367
      // Predicated region
      $region9: #{tpu_custom_call.1} parent=5 // pred_check
        _
      $region10: #{tpu_custom_call.1} parent=5 // pred_check_branch
        %370 = sbr.rel (%p367) target = $region12
      $region11: #{tpu_custom_call.1} parent=5 // pred_region
        %s371 = ssub.s32 %s27, 1
        // Predicated region
        $region13: #{tpu_custom_call.1} parent=11 // pred_check
          %p372 = pneg %p100
        $region14: #{tpu_custom_call.1} parent=11 // pred_check_branch
          %374 = sbr.rel (%p372) target = $region16
        $region15: #{tpu_custom_call.1} parent=11 // pred_region
          _
        $region16: #{tpu_custom_call.1} parent=11 // pred_fallthru
          _
        // Predicated region
        $region17: #{tpu_custom_call.1} parent=11 // pred_check
          %p375 = pneg %p121
        $region18: #{tpu_custom_call.1} parent=11 // pred_check_branch
          %377 = sbr.rel (%p375) target = $region20
        $region19: #{tpu_custom_call.1} parent=11 // pred_region
          _
        $region20: #{tpu_custom_call.1} parent=11 // pred_fallthru
          _
        // Predicated region
        $region21: #{tpu_custom_call.1} parent=11 // pred_check
          %p378 = pneg %p142
        $region22: #{tpu_custom_call.1} parent=11 // pred_check_branch
          %380 = sbr.rel (%p378) target = $region24
        $region23: #{tpu_custom_call.1} parent=11 // pred_region
          _
        $region24: #{tpu_custom_call.1} parent=11 // pred_fallthru
          _
        // Predicated region
        $region25: #{tpu_custom_call.1} parent=11 // pred_check
          %p381 = pneg %p163
        $region26: #{tpu_custom_call.1} parent=11 // pred_check_branch
          %383 = sbr.rel (%p381) target = $region28
        $region27: #{tpu_custom_call.1} parent=11 // pred_region
          _
        $region28: #{tpu_custom_call.1} parent=11 // pred_fallthru
          _
        // Predicated region
        $region29: #{tpu_custom_call.1} parent=11 // pred_check
          %p384 = pneg %p184
        $region30: #{tpu_custom_call.1} parent=11 // pred_check_branch
          %386 = sbr.rel (%p384) target = $region32
        $region31: #{tpu_custom_call.1} parent=11 // pred_region
          _
        $region32: #{tpu_custom_call.1} parent=11 // pred_fallthru
          _
        // Predicated region
        $region33: #{tpu_custom_call.1} parent=11 // pred_check
          %p387 = pneg %p205
        $region34: #{tpu_custom_call.1} parent=11 // pred_check_branch
          %389 = sbr.rel (%p387) target = $region36
        $region35: #{tpu_custom_call.1} parent=11 // pred_region
          _
        $region36: #{tpu_custom_call.1} parent=11 // pred_fallthru
          _
        // Predicated region
        $region37: #{tpu_custom_call.1} parent=11 // pred_check
          %p390 = pneg %p226
        $region38: #{tpu_custom_call.1} parent=11 // pred_check_branch
          %392 = sbr.rel (%p390) target = $region40
        $region39: #{tpu_custom_call.1} parent=11 // pred_region
          %394 = vsyncadd [#allocation6], 0
          %s395 = sshll.u32 %s8, 4
          %s396 = int_to_ptr.hbm [resolvable:$true] %s395
          %s397 = sshll.u32 [#allocation5], 4
          %s398 = int_to_ptr.vmem [resolvable:$true] %s397
          %403 = dma.hbm_to_vmem [thread:$0]  %s396, 256, %s398, [#allocation6], 64, 64, 4
        $region40: #{tpu_custom_call.1} parent=11 // pred_fallthru
          _
        // Predicated region
        $region41: #{tpu_custom_call.1} parent=11 // pred_check
          %p404 = pneg %p247
        $region42: #{tpu_custom_call.1} parent=11 // pred_check_branch
          %406 = sbr.rel (%p404) target = $region44
        $region43: #{tpu_custom_call.1} parent=11 // pred_region
          _
        $region44: #{tpu_custom_call.1} parent=11 // pred_fallthru
          _
        // Predicated region
        $region45: #{tpu_custom_call.1} parent=11 // pred_check
          %p407 = pneg %p268
        $region46: #{tpu_custom_call.1} parent=11 // pred_check_branch
          %409 = sbr.rel (%p407) target = $region48
        $region47: #{tpu_custom_call.1} parent=11 // pred_region
          _
        $region48: #{tpu_custom_call.1} parent=11 // pred_fallthru
          _
        // Predicated region
        $region49: #{tpu_custom_call.1} parent=11 // pred_check
          %p410 = pneg %p289
        $region50: #{tpu_custom_call.1} parent=11 // pred_check_branch
          %412 = sbr.rel (%p410) target = $region52
        $region51: #{tpu_custom_call.1} parent=11 // pred_region
          _
        $region52: #{tpu_custom_call.1} parent=11 // pred_fallthru
          _
        // Predicated region
        $region53: #{tpu_custom_call.1} parent=11 // pred_check
          %p413 = pneg %p310
        $region54: #{tpu_custom_call.1} parent=11 // pred_check_branch
          %415 = sbr.rel (%p413) target = $region56
        $region55: #{tpu_custom_call.1} parent=11 // pred_region
          _
        $region56: #{tpu_custom_call.1} parent=11 // pred_fallthru
          _
        // Predicated region
        $region57: #{tpu_custom_call.1} parent=11 // pred_check
          %p416 = pneg %p331
        $region58: #{tpu_custom_call.1} parent=11 // pred_check_branch
          %418 = sbr.rel (%p416) target = $region60
        $region59: #{tpu_custom_call.1} parent=11 // pred_region
          _
        $region60: #{tpu_custom_call.1} parent=11 // pred_fallthru
          _
      $region12: #{tpu_custom_call.1} parent=5 // pred_fallthru
        _
      %p419 = scmp.lt.s32.totalorder %s27, 2
      // Predicated region
      $region61: #{tpu_custom_call.1} parent=5 // pred_check
        %p420 = pneg %p419
      $region62: #{tpu_custom_call.1} parent=5 // pred_check_branch
        %422 = sbr.rel (%p420) target = $region64
      $region63: #{tpu_custom_call.1} parent=5 // pred_region
        // Predicated region
        $region65: #{tpu_custom_call.1} parent=63 // pred_check
          %p423 = pneg %p47
        $region66: #{tpu_custom_call.1} parent=63 // pred_check_branch
          %425 = sbr.rel (%p423) target = $region68
        $region67: #{tpu_custom_call.1} parent=63 // pred_region
          %p426 = scmp.lt.s32.totalorder %s27, 1
          %s427 = scalar_select %p426, %s27, 1
          %s428 = smul.addr %s427, 8
          %s429 = scalar_lea.vmem %s0, %s428
        $region68: #{tpu_custom_call.1} parent=63 // pred_fallthru
          _
        // Predicated region
        $region69: #{tpu_custom_call.1} parent=63 // pred_check
          %p430 = pneg %p73
        $region70: #{tpu_custom_call.1} parent=63 // pred_check_branch
          %432 = sbr.rel (%p430) target = $region72
        $region71: #{tpu_custom_call.1} parent=63 // pred_region
          %s433 = sand.u32 %s63, 1
          %s434 = scalar_lea.sflag [#allocation3], %s433
          %s435 = sand.u32 %s63, 1
          %s436 = scalar_lea.vmem [#allocation2], %s435
          %438 = vsyncadd %s434, 0
          %s439 = scalar_lea.hbm %s1, %s27
          %s441 = sshll.u32 %s439, 4
          %s442 = int_to_ptr.hbm [resolvable:$true] %s441
          %s443 = sshll.u32 %s436, 4
          %s444 = int_to_ptr.vmem [resolvable:$true] %s443
          %446 = dma.hbm_to_vmem [thread:$0]  %s442, 16, %s444, %s434
        $region72: #{tpu_custom_call.1} parent=63 // pred_fallthru
          _
      $region64: #{tpu_custom_call.1} parent=5 // pred_fallthru
        _
      %p447 = scmp.le.s32.totalorder 1, %s27
      %p448 = scmp.lt.s32.totalorder %s27, 3
      %p449 = pnand %p447, %p448
      %p450 = pneg %p449
      // Predicated region
      $region73: #{tpu_custom_call.1} parent=5 // pred_check
        _
      $region74: #{tpu_custom_call.1} parent=5 // pred_check_branch
        %452 = sbr.rel (%p449) target = $region76
      $region75: #{tpu_custom_call.1} parent=5 // pred_region
        %s453 = ssub.s32 %s27, 1
        %s454 = sand.u32 %s66, 1
        %s455 = scalar_lea.sflag [#allocation3], %s454
        %s456 = sand.u32 %s66, 1
        %s457 = scalar_lea.vmem [#allocation2], %s456
        // Predicated region
        $region77: #{tpu_custom_call.1} parent=75 // pred_check
          %p458 = pneg %p79
        $region78: #{tpu_custom_call.1} parent=75 // pred_check_branch
          %460 = sbr.rel (%p458) target = $region80
        $region79: #{tpu_custom_call.1} parent=75 // pred_region
          %462 = dma.done %s455, 16
        $region80: #{tpu_custom_call.1} parent=75 // pred_fallthru
          _
        // Predicated region
        $region81: #{tpu_custom_call.1} parent=75 // pred_check
          %p463 = pneg %p226
        $region82: #{tpu_custom_call.1} parent=75 // pred_check_branch
          %465 = sbr.rel (%p463) target = $region84
        $region83: #{tpu_custom_call.1} parent=75 // pred_region
          %467 = dma.done [#allocation6], 256
        $region84: #{tpu_custom_call.1} parent=75 // pred_fallthru
          _
        %p468 = scmp.lt.s32.totalorder %s32, 1
        %s469 = scalar_select %p468, %s32, 1
        %s470 = smul.addr %s469, 8
        %s471 = scalar_lea.vmem %s0, %s470
        %p472 = pneg %p53
        %p473 = pneg %p50
        %s474 = sand.u32 %s66, 1
        %s475 = scalar_lea.sflag [#allocation3], %s474
        %s476 = sand.u32 %s66, 1
        %s477 = scalar_lea.vmem [#allocation2], %s476
        %p478 = pneg %p79
        %p479 = pneg %p76
        %p480 = pneg %p100
        %p481 = pneg %p97
        %p482 = pneg %p121
        %p483 = pneg %p118
        %p484 = pneg %p142
        %p485 = pneg %p139
        %p486 = pneg %p163
        %p487 = pneg %p160
        %p488 = pneg %p184
        %p489 = pneg %p181
        %p490 = pneg %p205
        %p491 = pneg %p202
        %p492 = pneg %p226
        %p493 = pneg %p223
        %p494 = pneg %p247
        %p495 = pneg %p244
        %p496 = pneg %p268
        %p497 = pneg %p265
        %p498 = pneg %p289
        %p499 = pneg %p286
        %p500 = pneg %p310
        %p501 = pneg %p307
        %p502 = pneg %p331
        %p503 = pneg %p328
        %p504 = pneg %p357
        %p505 = pneg %p354
        %s506 = sand.u32 %s344, 1
        %s507 = scalar_lea.sflag [#allocation4], %s506
        %s508 = sand.u32 %s344, 1
        %s509 = smul.addr %s508, 8
        %s510 = scalar_lea.vmem [#allocation7], %s509
        %p511 = scmp.lt.s32.totalorder %s32, 1
        %s512 = scalar_select %p511, %s32, 1
        %s513 = smul.addr %s512, 8
        %s514 = scalar_lea.vmem %s0, %s513
        %v516 = vld [vmem:[%s514] sm:$0xff]
        %v517 = vpack.c.bf16 %v516, %v516
        %v518 = vld [vmem:[%s2] sm:$0xf]
        %v519 = vld [vmem:[%s2 + $0x4] sm:$0xf]
        %v520 = vld [vmem:[%s2 + $0x8] sm:$0xf]
        %v521 = vld [vmem:[%s2 + $0xc] sm:$0xf]
        %v522 = vld [vmem:[%s3] sm:$0x1]
        %v524 = vperm.slane %v522, 0
        %v530 = vunpack.c.l.b16 %v518
        %v531 = vunpack.c.l.b16 %v519
        %v532 = vunpack.c.l.b16 %v520
        %v533 = vunpack.c.l.b16 %v521
        %v534 = vpack.c.b16 %v531, %v530
        %v535 = vpack.c.b16 %v533, %v532
        %vm538 = vcmask 261120
        %v540 = vsel %vm538, %v517, 0
        %542 = vmatpush.bf16.msra.mxu0 0
        %543 = vmatpush.bf16.msra.mxu0 0
        %544 = vmatpush.bf16.msra.mxu0 0
        %545 = vmatpush.bf16.msra.mxu0 0
        %546 = vmatpush.bf16.msra.mxu0 0
        %547 = vmatpush.bf16.msra.mxu0 0
        %548 = vmatpush.bf16.msra.mxu0 %v535
        %549 = vmatpush.bf16.msra.mxu0 %v534
        %550 = vmatmul.bf16.gmra.mxu0 %v540
        %v551 = vpop.f32.mrf.mxu0
        %v552 = vadd.f32 %v524, %v551
        %v553 = vpop.f32.mrf.mxu0
        %554 = vdwg.mxu0
        %v555 = vld [vmem:[%s457] sm:$0x1]
        %v556 = vsub.f32 1.0, %v555
        %v557 = vmul.f32 %v556, -10000.0
        %v558 = vpack.c.bf16 %v552, %v552
        %560 = vrot.lane.b32.xlu0 %v558, 96
        %v561 = vpop.permute.xlu0 %560
        %vm562 = vcmask 64512
        %v564 = vsel %vm562, %v558, 0
        %v567 = vsel %vm562, %v561, 0
        %569 = vmatpush.bf16.xpose.msra.mxu0 0
        %570 = vmatpush.bf16.xpose.msra.mxu0 0
        %571 = vmatpush.bf16.xpose.msra.mxu0 0
        %572 = vmatpush.bf16.xpose.msra.mxu0 0
        %573 = vmatpush.bf16.xpose.msra.mxu0 0
        %574 = vmatpush.bf16.xpose.msra.mxu0 0
        %575 = vmatpush.bf16.xpose.msra.mxu0 0
        %576 = vmatpush.bf16.xpose.msra.mxu0 %v567
        %577 = vmatmul.bf16.gmra.mxu0 %v564
        %v578 = vpop.f32.mrf.mxu0
        %v579 = vadd.f32 0.0, %v578
        %v580 = vpop.f32.mrf.mxu0
        %581 = vdwg.mxu0
        %v582 = vmul.f32 %v579, 0.35355338
        %v584 = vperm.slane %v557, 0
        %v586 = vadd.f32 %v582, %v584
        %v587 = vsel %vm562, %v586, -inf
        %588 = vmax.xlane.f32.xlu0 %v587
        %v589 = vpop.xlane.xlu0 %588
        %v590 = vsub.f32 %v586, %v589
        %v591 = vmul.f32 %v590, 1.442695
        %v592 = vpow.pop %v591
        %v593 = vsel %vm562, %v592, 0.0
        %594 = vadd.xlane.f32.xlu0 %v593
        %v595 = vpop.xlane.xlu0 %594
        %v596 = vrcp.pop %v595
        %v597 = vmul.f32 %v592, %v596
        %v598 = vpack.c.bf16 %v597, %v597
        %599 = vrot.lane.b32.xlu0 %v558, 64
        %v600 = vpop.permute.xlu0 %599
        %v602 = vsel %vm562, %v598, 0
        %vm604 = vcmask 1043456
        %v606 = vsel %vm604, %v600, 0
        %608 = vmatpush.bf16.msra.mxu0 0
        %609 = vmatpush.bf16.msra.mxu0 0
        %610 = vmatpush.bf16.msra.mxu0 0
        %611 = vmatpush.bf16.msra.mxu0 0
        %612 = vmatpush.bf16.msra.mxu0 0
        %613 = vmatpush.bf16.msra.mxu0 0
        %614 = vmatpush.bf16.msra.mxu0 0
        %615 = vmatpush.bf16.msra.mxu0 %v606
        %616 = vmatmul.bf16.gmra.mxu0 %v602
        %v617 = vpop.f32.mrf.mxu0
        %v618 = vadd.f32 0.0, %v617
        %v619 = vpop.f32.mrf.mxu0
        %620 = vdwg.mxu0
        %621 = vrot.lane.b32.xlu0 %v558, 120
        %v622 = vpop.permute.xlu0 %621
        %623 = vrot.lane.b32.xlu0 %v558, 88
        %v624 = vpop.permute.xlu0 %623
        %v626 = vsel %vm562, %v622, 0
        %v629 = vsel %vm562, %v624, 0
        %631 = vmatpush.bf16.xpose.msra.mxu0 0
        %632 = vmatpush.bf16.xpose.msra.mxu0 0
        %633 = vmatpush.bf16.xpose.msra.mxu0 0
        %634 = vmatpush.bf16.xpose.msra.mxu0 0
        %635 = vmatpush.bf16.xpose.msra.mxu0 0
        %636 = vmatpush.bf16.xpose.msra.mxu0 0
        %637 = vmatpush.bf16.xpose.msra.mxu0 0
        %638 = vmatpush.bf16.xpose.msra.mxu0 %v629
        %639 = vmatmul.bf16.gmra.mxu0 %v626
        %v640 = vpop.f32.mrf.mxu0
        %v641 = vadd.f32 0.0, %v640
        %v642 = vpop.f32.mrf.mxu0
        %643 = vdwg.mxu0
        %v644 = vmul.f32 %v641, 0.35355338
        %v645 = vadd.f32 %v644, %v584
        %v646 = vsel %vm562, %v645, -inf
        %647 = vmax.xlane.f32.xlu0 %v646
        %v648 = vpop.xlane.xlu0 %647
        %v649 = vsub.f32 %v645, %v648
        %v650 = vmul.f32 %v649, 1.442695
        %v651 = vpow.pop %v650
        %v652 = vsel %vm562, %v651, 0.0
        %653 = vadd.xlane.f32.xlu0 %v652
        %v654 = vpop.xlane.xlu0 %653
        %v655 = vrcp.pop %v654
        %v656 = vmul.f32 %v651, %v655
        %v657 = vpack.c.bf16 %v656, %v656
        %658 = vrot.lane.b32.xlu0 %v558, 56
        %v659 = vpop.permute.xlu0 %658
        %v661 = vsel %vm562, %v657, 0
        %v664 = vsel %vm604, %v659, 0
        %666 = vmatpush.bf16.msra.mxu0 0
        %667 = vmatpush.bf16.msra.mxu0 0
        %668 = vmatpush.bf16.msra.mxu0 0
        %669 = vmatpush.bf16.msra.mxu0 0
        %670 = vmatpush.bf16.msra.mxu0 0
        %671 = vmatpush.bf16.msra.mxu0 0
        %672 = vmatpush.bf16.msra.mxu0 0
        %673 = vmatpush.bf16.msra.mxu0 %v664
        %674 = vmatmul.bf16.gmra.mxu0 %v661
        %v675 = vpop.f32.mrf.mxu0
        %v676 = vadd.f32 0.0, %v675
        %v677 = vpop.f32.mrf.mxu0
        %678 = vdwg.mxu0
        %679 = vrot.lane.b32.xlu0 %v558, 112
        %v680 = vpop.permute.xlu0 %679
        %681 = vrot.lane.b32.xlu0 %v558, 80
        %v682 = vpop.permute.xlu0 %681
        %v684 = vsel %vm562, %v680, 0
        %v687 = vsel %vm562, %v682, 0
        %689 = vmatpush.bf16.xpose.msra.mxu0 0
        %690 = vmatpush.bf16.xpose.msra.mxu0 0
        %691 = vmatpush.bf16.xpose.msra.mxu0 0
        %692 = vmatpush.bf16.xpose.msra.mxu0 0
        %693 = vmatpush.bf16.xpose.msra.mxu0 0
        %694 = vmatpush.bf16.xpose.msra.mxu0 0
        %695 = vmatpush.bf16.xpose.msra.mxu0 0
        %696 = vmatpush.bf16.xpose.msra.mxu0 %v687
        %697 = vmatmul.bf16.gmra.mxu0 %v684
        %v698 = vpop.f32.mrf.mxu0
        %v699 = vadd.f32 0.0, %v698
        %v700 = vpop.f32.mrf.mxu0
        %701 = vdwg.mxu0
        %v702 = vmul.f32 %v699, 0.35355338
        %v703 = vadd.f32 %v702, %v584
        %v704 = vsel %vm562, %v703, -inf
        %705 = vmax.xlane.f32.xlu0 %v704
        %v706 = vpop.xlane.xlu0 %705
        %v707 = vsub.f32 %v703, %v706
        %v708 = vmul.f32 %v707, 1.442695
        %v709 = vpow.pop %v708
        %v710 = vsel %vm562, %v709, 0.0
        %711 = vadd.xlane.f32.xlu0 %v710
        %v712 = vpop.xlane.xlu0 %711
        %v713 = vrcp.pop %v712
        %v714 = vmul.f32 %v709, %v713
        %v715 = vpack.c.bf16 %v714, %v714
        %716 = vrot.lane.b32.xlu0 %v558, 48
        %v717 = vpop.permute.xlu0 %716
        %v719 = vsel %vm562, %v715, 0
        %v722 = vsel %vm604, %v717, 0
        %724 = vmatpush.bf16.msra.mxu0 0
        %725 = vmatpush.bf16.msra.mxu0 0
        %726 = vmatpush.bf16.msra.mxu0 0
        %727 = vmatpush.bf16.msra.mxu0 0
        %728 = vmatpush.bf16.msra.mxu0 0
        %729 = vmatpush.bf16.msra.mxu0 0
        %730 = vmatpush.bf16.msra.mxu0 0
        %731 = vmatpush.bf16.msra.mxu0 %v722
        %732 = vmatmul.bf16.gmra.mxu0 %v719
        %v733 = vpop.f32.mrf.mxu0
        %v734 = vadd.f32 0.0, %v733
        %v735 = vpop.f32.mrf.mxu0
        %736 = vdwg.mxu0
        %737 = vrot.lane.b32.xlu0 %v558, 104
        %v738 = vpop.permute.xlu0 %737
        %739 = vrot.lane.b32.xlu0 %v558, 72
        %v740 = vpop.permute.xlu0 %739
        %v742 = vsel %vm562, %v738, 0
        %v745 = vsel %vm562, %v740, 0
        %747 = vmatpush.bf16.xpose.msra.mxu0 0
        %748 = vmatpush.bf16.xpose.msra.mxu0 0
        %749 = vmatpush.bf16.xpose.msra.mxu0 0
        %750 = vmatpush.bf16.xpose.msra.mxu0 0
        %751 = vmatpush.bf16.xpose.msra.mxu0 0
        %752 = vmatpush.bf16.xpose.msra.mxu0 0
        %753 = vmatpush.bf16.xpose.msra.mxu0 0
        %754 = vmatpush.bf16.xpose.msra.mxu0 %v745
        %755 = vmatmul.bf16.gmra.mxu0 %v742
        %v756 = vpop.f32.mrf.mxu0
        %v757 = vadd.f32 0.0, %v756
        %v758 = vpop.f32.mrf.mxu0
        %759 = vdwg.mxu0
        %v760 = vmul.f32 %v757, 0.35355338
        %v761 = vadd.f32 %v760, %v584
        %v762 = vsel %vm562, %v761, -inf
        %763 = vmax.xlane.f32.xlu0 %v762
        %v764 = vpop.xlane.xlu0 %763
        %v765 = vsub.f32 %v761, %v764
        %v766 = vmul.f32 %v765, 1.442695
        %v767 = vpow.pop %v766
        %v768 = vsel %vm562, %v767, 0.0
        %769 = vadd.xlane.f32.xlu0 %v768
        %v770 = vpop.xlane.xlu0 %769
        %v771 = vrcp.pop %v770
        %v772 = vmul.f32 %v767, %v771
        %v773 = vpack.c.bf16 %v772, %v772
        %774 = vrot.lane.b32.xlu0 %v558, 40
        %v775 = vpop.permute.xlu0 %774
        %v777 = vsel %vm562, %v773, 0
        %v780 = vsel %vm604, %v775, 0
        %782 = vmatpush.bf16.msra.mxu0 0
        %783 = vmatpush.bf16.msra.mxu0 0
        %784 = vmatpush.bf16.msra.mxu0 0
        %785 = vmatpush.bf16.msra.mxu0 0
        %786 = vmatpush.bf16.msra.mxu0 0
        %787 = vmatpush.bf16.msra.mxu0 0
        %788 = vmatpush.bf16.msra.mxu0 0
        %789 = vmatpush.bf16.msra.mxu0 %v780
        %790 = vmatmul.bf16.gmra.mxu0 %v777
        %v791 = vpop.f32.mrf.mxu0
        %v792 = vadd.f32 0.0, %v791
        %v793 = vpop.f32.mrf.mxu0
        %794 = vdwg.mxu0
        %796 = vrot.lane.b32.xlu0 %v676, 8
        %v797 = vpop.permute.xlu0 %796
        %800 = vrot.lane.b32.xlu0 %v734, 16
        %v801 = vpop.permute.xlu0 %800
        %804 = vrot.lane.b32.xlu0 %v792, 24
        %v805 = vpop.permute.xlu0 %804
        %v807 = vsel %vm562, %v618, %v797
        %vm808 = vcmask 130048
        %v809 = vsel %vm808, %v807, %v801
        %vm810 = vcmask 195584
        %v811 = vsel %vm810, %v809, %v805
        %v812 = vpack.c.bf16 %v811, %v811
        %v813 = vld [vmem:[%s4] sm:$0xf]
        %v814 = vld [vmem:[%s4 + $0x4] sm:$0xf]
        %v815 = vld [vmem:[%s4 + $0x8] sm:$0xf]
        %v816 = vld [vmem:[%s4 + $0xc] sm:$0xf]
        %v817 = vld [vmem:[%s5] sm:$0x1]
        %v819 = vperm.slane %v817, 0
        %v825 = vunpack.c.l.b16 %v813
        %v826 = vunpack.c.l.b16 %v814
        %v827 = vunpack.c.l.b16 %v815
        %v828 = vunpack.c.l.b16 %v816
        %v829 = vpack.c.b16 %v826, %v825
        %v830 = vpack.c.b16 %v828, %v827
        %v834 = vsel %vm538, %v812, 0
        %836 = vmatpush.bf16.msra.mxu0 0
        %837 = vmatpush.bf16.msra.mxu0 0
        %838 = vmatpush.bf16.msra.mxu0 0
        %839 = vmatpush.bf16.msra.mxu0 0
        %840 = vmatpush.bf16.msra.mxu0 0
        %841 = vmatpush.bf16.msra.mxu0 0
        %842 = vmatpush.bf16.msra.mxu0 %v830
        %843 = vmatpush.bf16.msra.mxu0 %v829
        %844 = vmatmul.bf16.gmra.mxu0 %v834
        %v845 = vpop.f32.mrf.mxu0
        %v846 = vadd.f32 %v819, %v845
        %v847 = vpop.f32.mrf.mxu0
        %848 = vdwg.mxu0
        %v849 = vadd.f32 %v846, %v516
        %v850 = vld [vmem:[%s6] sm:$0x1]
        %v851 = vld [vmem:[%s7] sm:$0x1]
        %v852 = vsel %vm538, %v849, 0.0
        %853 = vadd.xlane.f32.xlu0 %v852
        %v854 = vpop.xlane.xlu0 %853
        %v855 = vrcp.pop 32.0
        %v856 = vmul.f32 32.0, %v855
        %v857 = vsub.f32 1.0, %v856
        %v858 = vmul.f32 %v855, %v857
        %v859 = vadd.f32 %v855, %v858
        %vm860 = vweird.f32 %v855
        %v861 = vsel %vm860, %v855, %v859
        %v862 = vmul.f32 %v854, %v861
        %v863 = vsub.f32 %v849, %v862
        %v864 = vmul.f32 %v863, %v863
        %v865 = vsel %vm538, %v864, 0.0
        %866 = vadd.xlane.f32.xlu0 %v865
        %v867 = vpop.xlane.xlu0 %866
        %v868 = vmul.f32 %v867, %v861
        %v869 = vadd.f32 %v868, 1e-12
        %v870 = vrsqrt.pop %v869
        %v871 = vmul.f32 %v870, %v869
        %v872 = vmul.f32 %v871, %v870
        %v873 = vmul.f32 0.5, %v872
        %v874 = vsub.f32 1.5, %v873
        %v875 = vmul.f32 %v870, %v874
        %vm876 = vweird.f32 %v869
        %vm877 = vweird.f32 %v870
        %vm878 = vmor %vm876, %vm877
        %v879 = vsel %vm878, %v870, %v875
        %v880 = vmul.f32 %v863, %v879
        %v882 = vperm.slane %v850, 0
        %v884 = vmul.f32 %v880, %v882
        %v886 = vperm.slane %v851, 0
        %v888 = vadd.f32 %v884, %v886
        %v889 = vpack.c.bf16 %v888, %v888
        %v890 = vld [vmem:[#allocation5] sm:$0xf]
        %v891 = vld [vmem:[#allocation5 + $0x4] sm:$0xf]
        %v892 = vld [vmem:[#allocation5 + $0x8] sm:$0xf]
        %v893 = vld [vmem:[#allocation5 + $0xc] sm:$0xf]
        %v894 = vld [vmem:[%s9] sm:$0x1]
        %v896 = vperm.slane %v894, 0
        %v902 = vunpack.c.l.b16 %v890
        %v903 = vunpack.c.l.b16 %v891
        %v904 = vunpack.c.l.b16 %v892
        %v905 = vunpack.c.l.b16 %v893
        %v906 = vpack.c.b16 %v903, %v902
        %v907 = vpack.c.b16 %v905, %v904
        %v911 = vsel %vm538, %v889, 0
        %913 = vmatpush.bf16.msra.mxu0 0
        %914 = vmatpush.bf16.msra.mxu0 0
        %915 = vmatpush.bf16.msra.mxu0 0
        %916 = vmatpush.bf16.msra.mxu0 0
        %917 = vmatpush.bf16.msra.mxu0 0
        %918 = vmatpush.bf16.msra.mxu0 0
        %919 = vmatpush.bf16.msra.mxu0 %v907
        %920 = vmatpush.bf16.msra.mxu0 %v906
        %921 = vmatmul.bf16.gmra.mxu0 %v911
        %v922 = vpop.f32.mrf.mxu0
        %v923 = vadd.f32 %v896, %v922
        %v924 = vpop.f32.mrf.mxu0
        %925 = vdwg.mxu0
        %v926 = vmul.f32 %v923, 0.5
        %v927 = vmul.f32 %v923, 0.70710677
        %v928 = vmul.f32 %v927, %v927
        %v929 = vmin.f32 16.0, %v928
        %v930 = vmul.f32 %v929, 2.1237322e-06
        %v931 = vadd.f32 %v930, 0.00028619796
        %v932 = vmul.f32 %v929, %v931
        %v933 = vadd.f32 %v932, 0.0036580483
        %v934 = vmul.f32 %v929, %v933
        %v935 = vadd.f32 %v934, 0.05243302
        %v936 = vmul.f32 %v929, %v935
        %v937 = vadd.f32 %v936, 0.18741608
        %v938 = vmul.f32 %v929, %v937
        %v939 = vadd.f32 %v938, 1.1283791
        %v940 = vmul.f32 %v927, %v939
        %v941 = vmul.f32 %v929, 3.8918573e-05
        %v942 = vadd.f32 %v941, 0.001143296
        %v943 = vmul.f32 %v929, %v942
        %v944 = vadd.f32 %v943, 0.014752088
        %v945 = vmul.f32 %v929, %v944
        %v946 = vadd.f32 %v945, 0.112945676
        %v947 = vmul.f32 %v929, %v946
        %v948 = vadd.f32 %v947, 0.4994258
        %v949 = vmul.f32 %v929, %v948
        %v950 = vadd.f32 %v949, 1.0
        %v951 = vrcp.pop %v950
        %v952 = vmul.f32 %v950, %v951
        %v953 = vsub.f32 1.0, %v952
        %v954 = vmul.f32 %v951, %v953
        %v955 = vadd.f32 %v951, %v954
        %vm956 = vweird.f32 %v950
        %vm957 = vweird.f32 %v951
        %vm958 = vmor %vm956, %vm957
        %v959 = vsel %vm958, %v951, %v955
        %v960 = vand.u32 2147483647, %v950
        %vm961 = vcmp.eq.f32.partialorder %v960, 8.507059e+37
        %v962 = vand.u32 %v950, 2147483648
        %v963 = vor.u32 1.1754944e-38, %v962
        %v964 = vsel %vm961, %v963, %v959
        %v965 = vmul.f32 %v940, %v964
        %v966 = vmin.f32 %v965, 1.0
        %v967 = vmax.f32 %v966, -1.0
        %v968 = vadd.f32 %v967, 1.0
        %v969 = vmul.f32 %v926, %v968
        %v970 = vpack.c.bf16 %v969, %v969
        %v971 = vld [vmem:[%s10] sm:$0xf]
        %v972 = vld [vmem:[%s10 + $0x4] sm:$0xf]
        %v973 = vld [vmem:[%s10 + $0x8] sm:$0xf]
        %v974 = vld [vmem:[%s10 + $0xc] sm:$0xf]
        %v975 = vld [vmem:[%s10 + $0x10] sm:$0xf]
        %v976 = vld [vmem:[%s10 + $0x14] sm:$0xf]
        %v977 = vld [vmem:[%s10 + $0x18] sm:$0xf]
        %v978 = vld [vmem:[%s10 + $0x1c] sm:$0xf]
        %v979 = vld [vmem:[%s11] sm:$0x1]
        %v981 = vperm.slane %v979, 0
        %v991 = vunpack.c.l.b16 %v971
        %v992 = vunpack.c.l.b16 %v972
        %v993 = vunpack.c.l.b16 %v973
        %v994 = vunpack.c.l.b16 %v974
        %v995 = vunpack.c.l.b16 %v975
        %v996 = vunpack.c.l.b16 %v976
        %v997 = vunpack.c.l.b16 %v977
        %v998 = vunpack.c.l.b16 %v978
        %v999 = vpack.c.b16 %v992, %v991
        %v1000 = vpack.c.b16 %v994, %v993
        %v1001 = vpack.c.b16 %v996, %v995
        %v1002 = vpack.c.b16 %v998, %v997
        %vm1007 = vcmask 523264
        %v1009 = vsel %vm1007, %v970, 0
        %1011 = vmatpush.bf16.msra.mxu0 0
        %1012 = vmatpush.bf16.msra.mxu0 0
        %1013 = vmatpush.bf16.msra.mxu0 0
        %1014 = vmatpush.bf16.msra.mxu0 0
        %1015 = vmatpush.bf16.msra.mxu0 %v1002
        %1016 = vmatpush.bf16.msra.mxu0 %v1001
        %1017 = vmatpush.bf16.msra.mxu0 %v1000
        %1018 = vmatpush.bf16.msra.mxu0 %v999
        %1019 = vmatmul.bf16.gmra.mxu0 %v1009
        %v1020 = vpop.f32.mrf.mxu0
        %v1021 = vadd.f32 %v981, %v1020
        %v1022 = vpop.f32.mrf.mxu0
        %1023 = vdwg.mxu0
        %v1024 = vadd.f32 %v1021, %v888
        %v1025 = vld [vmem:[%s12] sm:$0x1]
        %v1026 = vld [vmem:[%s13] sm:$0x1]
        %v1027 = vsel %vm538, %v1024, 0.0
        %1028 = vadd.xlane.f32.xlu0 %v1027
        %v1029 = vpop.xlane.xlu0 %1028
        %v1030 = vmul.f32 %v1029, %v861
        %v1031 = vsub.f32 %v1024, %v1030
        %v1032 = vmul.f32 %v1031, %v1031
        %v1033 = vsel %vm538, %v1032, 0.0
        %1034 = vadd.xlane.f32.xlu0 %v1033
        %v1035 = vpop.xlane.xlu0 %1034
        %v1036 = vmul.f32 %v1035, %v861
        %v1037 = vadd.f32 %v1036, 1e-12
        %v1038 = vrsqrt.pop %v1037
        %v1039 = vmul.f32 %v1038, %v1037
        %v1040 = vmul.f32 %v1039, %v1038
        %v1041 = vmul.f32 0.5, %v1040
        %v1042 = vsub.f32 1.5, %v1041
        %v1043 = vmul.f32 %v1038, %v1042
        %vm1044 = vweird.f32 %v1037
        %vm1045 = vweird.f32 %v1038
        %vm1046 = vmor %vm1044, %vm1045
        %v1047 = vsel %vm1046, %v1038, %v1043
        %v1048 = vmul.f32 %v1031, %v1047
        %v1050 = vperm.slane %v1025, 0
        %v1052 = vmul.f32 %v1048, %v1050
        %v1054 = vperm.slane %v1026, 0
        %v1056 = vadd.f32 %v1052, %v1054
        %1057 = vst.msk [vmem:[%s510] sm:$0xff] %vm538, %v1056
        %s1058 = sand.u32 %s344, 1
        %s1059 = scalar_lea.sflag [#allocation4], %s1058
        %s1060 = sand.u32 %s344, 1
        %s1061 = smul.addr %s1060, 8
        %s1062 = scalar_lea.vmem [#allocation7], %s1061
        // Predicated region
        $region85: #{tpu_custom_call.1} parent=75 // pred_check
          %p1063 = pneg %p354
        $region86: #{tpu_custom_call.1} parent=75 // pred_check_branch
          %1065 = sbr.rel (%p1063) target = $region88
        $region87: #{tpu_custom_call.1} parent=75 // pred_region
          %1067 = vsyncadd %s1059, 0
          %s1068 = smul.addr %s32, 8
          %s1069 = scalar_lea.hbm %s14, %s1068
          %s1071 = sshll.u32 %s1062, 4
          %s1072 = int_to_ptr.vmem [resolvable:$true] %s1071
          %s1073 = sshll.u32 %s1069, 4
          %s1074 = int_to_ptr.hbm [resolvable:$true] %s1073
          %1076 = dma.vmem_to_hbm [thread:$0]  %s1072, 128, %s1074, %s1059
        $region88: #{tpu_custom_call.1} parent=75 // pred_fallthru
          _
      $region76: #{tpu_custom_call.1} parent=5 // pred_fallthru
        _
      %p1077 = scmp.le.s32.totalorder 2, %s27
      // Predicated region
      $region89: #{tpu_custom_call.1} parent=5 // pred_check
        %p1078 = pneg %p1077
      $region90: #{tpu_custom_call.1} parent=5 // pred_check_branch
        %1080 = sbr.rel (%p1078) target = $region92
      $region91: #{tpu_custom_call.1} parent=5 // pred_region
        %s1081 = ssub.s32 %s27, 2
        // Predicated region
        $region93: #{tpu_custom_call.1} parent=91 // pred_check
          %p1082 = pneg %p360
        $region94: #{tpu_custom_call.1} parent=91 // pred_check_branch
          %1084 = sbr.rel (%p1082) target = $region96
        $region95: #{tpu_custom_call.1} parent=91 // pred_region
          %s1085 = sand.u32 %s345, 1
          %s1086 = scalar_lea.sflag [#allocation4], %s1085
          %s1087 = sand.u32 %s345, 1
          %s1088 = smul.addr %s1087, 8
          %s1089 = scalar_lea.vmem [#allocation7], %s1088
          %1091 = dma.done %s1086, 128
        $region96: #{tpu_custom_call.1} parent=91 // pred_fallthru
          _
      $region92: #{tpu_custom_call.1} parent=5 // pred_fallthru
        _
    $region6: #{tpu_custom_call.1} parent=1 // loop_footer
      %s31 = sadd.s32 1, %s27
    $region7: #{tpu_custom_call.1} parent=1 // loop_footer_branch
      %26 = sbr.rel target = $region3
    $region8: #{tpu_custom_call.1} parent=1 // loop_exit
      _
    %1092 = vsyncpa [#allocation3], 1
    %s1093 = scalar_lea.sflag [#allocation3], 1
    %1094 = vsyncpa %s1093, 1
    %1095 = vsyncpa [#allocation6], 1
    %1096 = vsyncpa [#allocation4], 1
    %s1097 = scalar_lea.sflag [#allocation4], 1
    %1098 = vsyncpa %s1097, 1

</llo_original>
